<compile_context>
chip_gen: v7x
topology: tpu7x:2x2x1
jax: 0.10.0
libtpu: 0.0.40
codegen_flags: <defaults>
</compile_context>

<pallas_src>
import math

import jax
import jax.numpy as jnp
from jax.experimental import pallas as pl
from jax.experimental.pallas import tpu as pltpu

LANES = 128          # lane width; every weight block is stored as (128, 128)
_W_ROWS = LANES      # rows reserved per weight tile
_B_ROWS = 8          # sublane-aligned block holding the bias in row 0
_LAYER_ROWS = _W_ROWS + _B_ROWS


def _softplus(x):
    # Numerically stable softplus from ops that lower cleanly in Mosaic.
    return jnp.maximum(x, 0.0) + jnp.log(1.0 + jnp.exp(-jnp.abs(x)))


def pack_params(weights, biases):
    """Pack all layers into one lane-dense f32 slab of (n_layers*136, 128).

    Per layer: 128 weight rows (rows >= fan_in zero, lanes >= fan_out zero),
    then 8 rows with the bias in row 0 (lanes >= fan_out zero). The zero
    padding is what keeps the padded activation lanes exact through the net.
    Returns (slab, layout) with layout[i] = (w_row, b_row).
    """
    n_layers = len(weights)
    slab = jnp.zeros((n_layers * _LAYER_ROWS, LANES), jnp.float32)
    layout = []
    for li, (w, b) in enumerate(zip(weights, biases)):
        fi, fo = w.shape
        assert fi <= LANES and fo <= LANES, "layer dims must fit in 128 lanes"
        w_row = li * _LAYER_ROWS
        b_row = w_row + _W_ROWS
        slab = slab.at[w_row:w_row + fi, :fo].set(w.astype(jnp.float32))
        slab = slab.at[b_row, :fo].set(b.astype(jnp.float32))
        layout.append((w_row, b_row))
    return slab, tuple(layout)


def _make_kernel(layout, num_steps, batch):
    n_layers = len(layout)

    def kernel(y0_ref, p_ref, out_ref):
        # Hoisted: pre-broadcast each (1,128) bias row to a full (B,128) vreg
        # once; inside the loop the bias add is a plain full-vreg VPU add.
        b_bc = [jnp.broadcast_to(p_ref[b_row:b_row + 1, :], (batch, LANES))
                for (_, b_row) in layout]

        y = y0_ref[...]                 # (B, 128); lanes >= D are zero
        out_ref[0] = y                  # ys[0] = y0  (lane-dense store)

        # Fully unrolled Euler loop (num_steps is small & static).
        # TODO(synk): for large T switch to lax.fori_loop(..., unroll=k) with
        # out_ref[pl.ds(...)] writes to bound code size / vreg live ranges.
        for i in range(num_steps):
            h = y
            for li, (w_row, _) in enumerate(layout):
                # Load the (128,128) weight tile from VMEM at the matmul site
                # (unmasked vld) rather than holding 3 tiles register-resident.
                w = p_ref[w_row:w_row + _W_ROWS, :]
                h = jnp.dot(h, w, preferred_element_type=jnp.float32) + b_bc[li]
                if li == 0:
                    h = jnp.tanh(h)
                elif li < n_layers - 1:
                    h = _softplus(h)
            # dt already folded into the last layer's weights/bias host-side.
            y = y + h
            out_ref[i + 1] = y

    return kernel


def make_neural_ode_forward(weights, biases):
    """Factory: packs parameters once, returns jitted forward(y0, t)->(T,B,D)."""
    slab, layout = pack_params(weights, biases)      # cached, off the hot path
    last_w_row = layout[-1][0]

    @jax.jit
    def forward(y0, t):
        B, D = y0.shape
        T = t.shape[0]
        num_steps = T - 1
        dt = (t[1] - t[0]).astype(jnp.float32)       # fixed dt, as in reference

        # Fold dt into the last Linear (W_last*dt, b_last*dt): one tiny scale
        # of the cached slab per call; the in-kernel step becomes y = y + h.
        slab_dt = slab.at[last_w_row:last_w_row + _LAYER_ROWS, :].multiply(dt)

        # Lane-dense activations: pad y0 to (B, 128); padded lanes stay zero.
        y0p = jnp.zeros((B, LANES), jnp.float32).at[:, :D].set(
            y0.astype(jnp.float32))

        kernel = _make_kernel(layout, num_steps, B)
        out = pl.pallas_call(
            kernel,
            out_shape=jax.ShapeDtypeStruct((T, B, LANES), jnp.float32),
            in_specs=[
                pl.BlockSpec(memory_space=pltpu.MemorySpace.VMEM),  # y0 (padded)
                pl.BlockSpec(memory_space=pltpu.MemorySpace.VMEM),  # packed params
            ],
            out_specs=pl.BlockSpec(memory_space=pltpu.MemorySpace.VMEM),
        )(y0p, slab_dt)
        # Slice the lane-dense trajectory back to the true feature dim.
        return out[:, :, :D]

    return forward


def reference_forward(y0, t, weights, biases):
    """Pure-JAX reference mirroring euler_ode_solver + ODEFunc."""
    dt = t[1] - t[0]
    n_layers = len(weights)

    def ode_func(y):
        h = y
        for li, (w, b) in enumerate(zip(weights, biases)):
            h = h @ w + b
            if li == 0:
                h = jnp.tanh(h)
            elif li < n_layers - 1:
                h = _softplus(h)
        return h

    ys = [y0]
    y = y0
    for _ in range(t.shape[0] - 1):
        y = y + ode_func(y) * dt
        ys.append(y)
    return jnp.stack(ys)


if __name__ == "__main__":
    INPUT_DIM = 8
    HIDDEN_DIM = 32
    NUM_LAYERS = 2       # ODEFunc builds NUM_LAYERS + 1 Linear layers
    BATCH = 8
    T = 8                # number of time points -> 7 Euler steps

    root = jax.random.PRNGKey(0)
    n_lin = NUM_LAYERS + 1
    keys = jax.random.split(root, 2 * n_lin + 1)

    dims = ([(INPUT_DIM, HIDDEN_DIM)]
            + [(HIDDEN_DIM, HIDDEN_DIM)] * (NUM_LAYERS - 1)
            + [(HIDDEN_DIM, INPUT_DIM)])
    weights, biases = [], []
    for li, (fi, fo) in enumerate(dims):
        bound = 1.0 / math.sqrt(fi)       # PyTorch nn.Linear default init
        w = jax.random.uniform(keys[2 * li], (fi, fo), jnp.float32, -bound, bound)
        b = jax.random.uniform(keys[2 * li + 1], (fo,), jnp.float32, -bound, bound)
        weights.append(w)
        biases.append(b)

    y0 = jax.random.normal(keys[-1], (BATCH, INPUT_DIM), jnp.float32)
    t = jnp.linspace(0.0, 0.7, T).astype(jnp.float32)

    forward = make_neural_ode_forward(weights, biases)
    out = forward(y0, t)
    jax.block_until_ready(out)

    ref = reference_forward(y0, t, weights, biases)
    assert out.shape == (T, BATCH, INPUT_DIM)
    assert jnp.allclose(out, ref, rtol=1e-3, atol=1e-3), float(
        jnp.max(jnp.abs(out - ref)))

    print("KERNEL_OK")
</pallas_src>

<mosaic_0001>
module attributes {stable_mosaic.version = 11 : i64} {
  func.func @kernel(%arg0: memref<8x128xf32, #tpu.memory_space<vmem>>, %arg1: memref<408x128xf32, #tpu.memory_space<vmem>>, %arg2: memref<8x8x128xf32, #tpu.memory_space<vmem>>) attributes {dimension_semantics = [], scalar_prefetch = 0 : i64, scratch_operands = 0 : i64, tpu.core_type = #tpu.core_type<tc>} {
    %c128 = arith.constant 128 : index
    %c0 = arith.constant 0 : index
    %0 = vector.load %arg1[%c128, %c0] : memref<408x128xf32, #tpu.memory_space<vmem>>, vector<1x128xf32>
    %1 = vector.shape_cast %0 : vector<1x128xf32> to vector<1x128xf32>
    %2 = vector.broadcast %1 : vector<1x128xf32> to vector<8x128xf32>
    %c264 = arith.constant 264 : index
    %c0_0 = arith.constant 0 : index
    %3 = vector.load %arg1[%c264, %c0_0] : memref<408x128xf32, #tpu.memory_space<vmem>>, vector<1x128xf32>
    %4 = vector.shape_cast %3 : vector<1x128xf32> to vector<1x128xf32>
    %5 = vector.broadcast %4 : vector<1x128xf32> to vector<8x128xf32>
    %c400 = arith.constant 400 : index
    %c0_1 = arith.constant 0 : index
    %6 = vector.load %arg1[%c400, %c0_1] : memref<408x128xf32, #tpu.memory_space<vmem>>, vector<1x128xf32>
    %7 = vector.shape_cast %6 : vector<1x128xf32> to vector<1x128xf32>
    %8 = vector.broadcast %7 : vector<1x128xf32> to vector<8x128xf32>
    %c0_2 = arith.constant 0 : index
    %c0_3 = arith.constant 0 : index
    %9 = vector.load %arg0[%c0_2, %c0_3] : memref<8x128xf32, #tpu.memory_space<vmem>>, vector<8x128xf32>
    %c0_4 = arith.constant 0 : index
    %c0_5 = arith.constant 0 : index
    %c0_6 = arith.constant 0 : index
    %10 = vector.load %arg2[%c0_4, %c0_5, %c0_6] : memref<8x8x128xf32, #tpu.memory_space<vmem>>, vector<1x8x128xf32>
    %11 = vector.shape_cast %10 : vector<1x8x128xf32> to vector<8x128xf32>
    %12 = vector.shape_cast %9 : vector<8x128xf32> to vector<1x8x128xf32>
    tpu.vector_store %arg2[%c0_4, %c0_5, %c0_6], %12 {strides = array<i32>} : memref<8x8x128xf32, #tpu.memory_space<vmem>>, vector<1x8x128xf32>,
    %c0_7 = arith.constant 0 : index
    %c0_8 = arith.constant 0 : index
    %13 = vector.load %arg1[%c0_7, %c0_8] : memref<408x128xf32, #tpu.memory_space<vmem>>, vector<128x128xf32>
    %cst = arith.constant dense<0.000000e+00> : vector<8x128xf32>
    %14 = tpu.matmul %9, %13, %cst {dimension_numbers = #tpu.dot_dimension_numbers<[1], [0], [0], [1], [0, 0, 1, 1], [], []>} : vector<8x128xf32>, vector<128x128xf32>, vector<8x128xf32> -> vector<8x128xf32>
    %15 = arith.addf %14, %2 : vector<8x128xf32>
    %16 = math.tanh %15 : vector<8x128xf32>
    %c136 = arith.constant 136 : index
    %c0_9 = arith.constant 0 : index
    %17 = vector.load %arg1[%c136, %c0_9] : memref<408x128xf32, #tpu.memory_space<vmem>>, vector<128x128xf32>
    %cst_10 = arith.constant dense<0.000000e+00> : vector<8x128xf32>
    %18 = tpu.matmul %16, %17, %cst_10 {dimension_numbers = #tpu.dot_dimension_numbers<[1], [0], [0], [1], [0, 0, 1, 1], [], []>} : vector<8x128xf32>, vector<128x128xf32>, vector<8x128xf32> -> vector<8x128xf32>
    %19 = arith.addf %18, %5 : vector<8x128xf32>
    %cst_11 = arith.constant 0.000000e+00 : f32
    %20 = vector.broadcast %cst_11 : f32 to vector<8x128xf32>
    %21 = arith.maximumf %19, %20 : vector<8x128xf32>
    %22 = math.absf %19 : vector<8x128xf32>
    %cst_12 = arith.constant 0.000000e+00 : f32
    %23 = vector.broadcast %cst_12 : f32 to vector<8x128xf32>
    %24 = arith.subf %23, %22 : vector<8x128xf32>
    %25 = math.exp %24 : vector<8x128xf32>
    %cst_13 = arith.constant 1.000000e+00 : f32
    %26 = vector.broadcast %cst_13 : f32 to vector<8x128xf32>
    %27 = arith.addf %26, %25 : vector<8x128xf32>
    %28 = math.log %27 : vector<8x128xf32>
    %29 = arith.addf %21, %28 : vector<8x128xf32>
    %c272 = arith.constant 272 : index
    %c0_14 = arith.constant 0 : index
    %30 = vector.load %arg1[%c272, %c0_14] : memref<408x128xf32, #tpu.memory_space<vmem>>, vector<128x128xf32>
    %cst_15 = arith.constant dense<0.000000e+00> : vector<8x128xf32>
    %31 = tpu.matmul %29, %30, %cst_15 {dimension_numbers = #tpu.dot_dimension_numbers<[1], [0], [0], [1], [0, 0, 1, 1], [], []>} : vector<8x128xf32>, vector<128x128xf32>, vector<8x128xf32> -> vector<8x128xf32>
    %32 = arith.addf %31, %8 : vector<8x128xf32>
    %33 = arith.addf %9, %32 : vector<8x128xf32>
    %c1 = arith.constant 1 : index
    %c0_16 = arith.constant 0 : index
    %c0_17 = arith.constant 0 : index
    %34 = vector.load %arg2[%c1, %c0_16, %c0_17] : memref<8x8x128xf32, #tpu.memory_space<vmem>>, vector<1x8x128xf32>
    %35 = vector.shape_cast %34 : vector<1x8x128xf32> to vector<8x128xf32>
    %36 = vector.shape_cast %33 : vector<8x128xf32> to vector<1x8x128xf32>
    tpu.vector_store %arg2[%c1, %c0_16, %c0_17], %36 {strides = array<i32>} : memref<8x8x128xf32, #tpu.memory_space<vmem>>, vector<1x8x128xf32>,
    %c0_18 = arith.constant 0 : index
    %c0_19 = arith.constant 0 : index
    %37 = vector.load %arg1[%c0_18, %c0_19] : memref<408x128xf32, #tpu.memory_space<vmem>>, vector<128x128xf32>
    %cst_20 = arith.constant dense<0.000000e+00> : vector<8x128xf32>
    %38 = tpu.matmul %33, %37, %cst_20 {dimension_numbers = #tpu.dot_dimension_numbers<[1], [0], [0], [1], [0, 0, 1, 1], [], []>} : vector<8x128xf32>, vector<128x128xf32>, vector<8x128xf32> -> vector<8x128xf32>
    %39 = arith.addf %38, %2 : vector<8x128xf32>
    %40 = math.tanh %39 : vector<8x128xf32>
    %c136_21 = arith.constant 136 : index
    %c0_22 = arith.constant 0 : index
    %41 = vector.load %arg1[%c136_21, %c0_22] : memref<408x128xf32, #tpu.memory_space<vmem>>, vector<128x128xf32>
    %cst_23 = arith.constant dense<0.000000e+00> : vector<8x128xf32>
    %42 = tpu.matmul %40, %41, %cst_23 {dimension_numbers = #tpu.dot_dimension_numbers<[1], [0], [0], [1], [0, 0, 1, 1], [], []>} : vector<8x128xf32>, vector<128x128xf32>, vector<8x128xf32> -> vector<8x128xf32>
    %43 = arith.addf %42, %5 : vector<8x128xf32>
    %cst_24 = arith.constant 0.000000e+00 : f32
    %44 = vector.broadcast %cst_24 : f32 to vector<8x128xf32>
    %45 = arith.maximumf %43, %44 : vector<8x128xf32>
    %46 = math.absf %43 : vector<8x128xf32>
    %cst_25 = arith.constant 0.000000e+00 : f32
    %47 = vector.broadcast %cst_25 : f32 to vector<8x128xf32>
    %48 = arith.subf %47, %46 : vector<8x128xf32>
    %49 = math.exp %48 : vector<8x128xf32>
    %cst_26 = arith.constant 1.000000e+00 : f32
    %50 = vector.broadcast %cst_26 : f32 to vector<8x128xf32>
    %51 = arith.addf %50, %49 : vector<8x128xf32>
    %52 = math.log %51 : vector<8x128xf32>
    %53 = arith.addf %45, %52 : vector<8x128xf32>
    %c272_27 = arith.constant 272 : index
    %c0_28 = arith.constant 0 : index
    %54 = vector.load %arg1[%c272_27, %c0_28] : memref<408x128xf32, #tpu.memory_space<vmem>>, vector<128x128xf32>
    %cst_29 = arith.constant dense<0.000000e+00> : vector<8x128xf32>
    %55 = tpu.matmul %53, %54, %cst_29 {dimension_numbers = #tpu.dot_dimension_numbers<[1], [0], [0], [1], [0, 0, 1, 1], [], []>} : vector<8x128xf32>, vector<128x128xf32>, vector<8x128xf32> -> vector<8x128xf32>
    %56 = arith.addf %55, %8 : vector<8x128xf32>
    %57 = arith.addf %33, %56 : vector<8x128xf32>
    %c2 = arith.constant 2 : index
    %c0_30 = arith.constant 0 : index
    %c0_31 = arith.constant 0 : index
    %58 = vector.load %arg2[%c2, %c0_30, %c0_31] : memref<8x8x128xf32, #tpu.memory_space<vmem>>, vector<1x8x128xf32>
    %59 = vector.shape_cast %58 : vector<1x8x128xf32> to vector<8x128xf32>
    %60 = vector.shape_cast %57 : vector<8x128xf32> to vector<1x8x128xf32>
    tpu.vector_store %arg2[%c2, %c0_30, %c0_31], %60 {strides = array<i32>} : memref<8x8x128xf32, #tpu.memory_space<vmem>>, vector<1x8x128xf32>,
    %c0_32 = arith.constant 0 : index
    %c0_33 = arith.constant 0 : index
    %61 = vector.load %arg1[%c0_32, %c0_33] : memref<408x128xf32, #tpu.memory_space<vmem>>, vector<128x128xf32>
    %cst_34 = arith.constant dense<0.000000e+00> : vector<8x128xf32>
    %62 = tpu.matmul %57, %61, %cst_34 {dimension_numbers = #tpu.dot_dimension_numbers<[1], [0], [0], [1], [0, 0, 1, 1], [], []>} : vector<8x128xf32>, vector<128x128xf32>, vector<8x128xf32> -> vector<8x128xf32>
    %63 = arith.addf %62, %2 : vector<8x128xf32>
    %64 = math.tanh %63 : vector<8x128xf32>
    %c136_35 = arith.constant 136 : index
    %c0_36 = arith.constant 0 : index
    %65 = vector.load %arg1[%c136_35, %c0_36] : memref<408x128xf32, #tpu.memory_space<vmem>>, vector<128x128xf32>
    %cst_37 = arith.constant dense<0.000000e+00> : vector<8x128xf32>
    %66 = tpu.matmul %64, %65, %cst_37 {dimension_numbers = #tpu.dot_dimension_numbers<[1], [0], [0], [1], [0, 0, 1, 1], [], []>} : vector<8x128xf32>, vector<128x128xf32>, vector<8x128xf32> -> vector<8x128xf32>
    %67 = arith.addf %66, %5 : vector<8x128xf32>
    %cst_38 = arith.constant 0.000000e+00 : f32
    %68 = vector.broadcast %cst_38 : f32 to vector<8x128xf32>
    %69 = arith.maximumf %67, %68 : vector<8x128xf32>
    %70 = math.absf %67 : vector<8x128xf32>
    %cst_39 = arith.constant 0.000000e+00 : f32
    %71 = vector.broadcast %cst_39 : f32 to vector<8x128xf32>
    %72 = arith.subf %71, %70 : vector<8x128xf32>
    %73 = math.exp %72 : vector<8x128xf32>
    %cst_40 = arith.constant 1.000000e+00 : f32
    %74 = vector.broadcast %cst_40 : f32 to vector<8x128xf32>
    %75 = arith.addf %74, %73 : vector<8x128xf32>
    %76 = math.log %75 : vector<8x128xf32>
    %77 = arith.addf %69, %76 : vector<8x128xf32>
    %c272_41 = arith.constant 272 : index
    %c0_42 = arith.constant 0 : index
    %78 = vector.load %arg1[%c272_41, %c0_42] : memref<408x128xf32, #tpu.memory_space<vmem>>, vector<128x128xf32>
    %cst_43 = arith.constant dense<0.000000e+00> : vector<8x128xf32>
    %79 = tpu.matmul %77, %78, %cst_43 {dimension_numbers = #tpu.dot_dimension_numbers<[1], [0], [0], [1], [0, 0, 1, 1], [], []>} : vector<8x128xf32>, vector<128x128xf32>, vector<8x128xf32> -> vector<8x128xf32>
    %80 = arith.addf %79, %8 : vector<8x128xf32>
    %81 = arith.addf %57, %80 : vector<8x128xf32>
    %c3 = arith.constant 3 : index
    %c0_44 = arith.constant 0 : index
    %c0_45 = arith.constant 0 : index
    %82 = vector.load %arg2[%c3, %c0_44, %c0_45] : memref<8x8x128xf32, #tpu.memory_space<vmem>>, vector<1x8x128xf32>
    %83 = vector.shape_cast %82 : vector<1x8x128xf32> to vector<8x128xf32>
    %84 = vector.shape_cast %81 : vector<8x128xf32> to vector<1x8x128xf32>
    tpu.vector_store %arg2[%c3, %c0_44, %c0_45], %84 {strides = array<i32>} : memref<8x8x128xf32, #tpu.memory_space<vmem>>, vector<1x8x128xf32>,
    %c0_46 = arith.constant 0 : index
    %c0_47 = arith.constant 0 : index
    %85 = vector.load %arg1[%c0_46, %c0_47] : memref<408x128xf32, #tpu.memory_space<vmem>>, vector<128x128xf32>
    %cst_48 = arith.constant dense<0.000000e+00> : vector<8x128xf32>
    %86 = tpu.matmul %81, %85, %cst_48 {dimension_numbers = #tpu.dot_dimension_numbers<[1], [0], [0], [1], [0, 0, 1, 1], [], []>} : vector<8x128xf32>, vector<128x128xf32>, vector<8x128xf32> -> vector<8x128xf32>
    %87 = arith.addf %86, %2 : vector<8x128xf32>
    %88 = math.tanh %87 : vector<8x128xf32>
    %c136_49 = arith.constant 136 : index
    %c0_50 = arith.constant 0 : index
    %89 = vector.load %arg1[%c136_49, %c0_50] : memref<408x128xf32, #tpu.memory_space<vmem>>, vector<128x128xf32>
    %cst_51 = arith.constant dense<0.000000e+00> : vector<8x128xf32>
    %90 = tpu.matmul %88, %89, %cst_51 {dimension_numbers = #tpu.dot_dimension_numbers<[1], [0], [0], [1], [0, 0, 1, 1], [], []>} : vector<8x128xf32>, vector<128x128xf32>, vector<8x128xf32> -> vector<8x128xf32>
    %91 = arith.addf %90, %5 : vector<8x128xf32>
    %cst_52 = arith.constant 0.000000e+00 : f32
    %92 = vector.broadcast %cst_52 : f32 to vector<8x128xf32>
    %93 = arith.maximumf %91, %92 : vector<8x128xf32>
    %94 = math.absf %91 : vector<8x128xf32>
    %cst_53 = arith.constant 0.000000e+00 : f32
    %95 = vector.broadcast %cst_53 : f32 to vector<8x128xf32>
    %96 = arith.subf %95, %94 : vector<8x128xf32>
    %97 = math.exp %96 : vector<8x128xf32>
    %cst_54 = arith.constant 1.000000e+00 : f32
    %98 = vector.broadcast %cst_54 : f32 to vector<8x128xf32>
    %99 = arith.addf %98, %97 : vector<8x128xf32>
    %100 = math.log %99 : vector<8x128xf32>
    %101 = arith.addf %93, %100 : vector<8x128xf32>
    %c272_55 = arith.constant 272 : index
    %c0_56 = arith.constant 0 : index
    %102 = vector.load %arg1[%c272_55, %c0_56] : memref<408x128xf32, #tpu.memory_space<vmem>>, vector<128x128xf32>
    %cst_57 = arith.constant dense<0.000000e+00> : vector<8x128xf32>
    %103 = tpu.matmul %101, %102, %cst_57 {dimension_numbers = #tpu.dot_dimension_numbers<[1], [0], [0], [1], [0, 0, 1, 1], [], []>} : vector<8x128xf32>, vector<128x128xf32>, vector<8x128xf32> -> vector<8x128xf32>
    %104 = arith.addf %103, %8 : vector<8x128xf32>
    %105 = arith.addf %81, %104 : vector<8x128xf32>
    %c4 = arith.constant 4 : index
    %c0_58 = arith.constant 0 : index
    %c0_59 = arith.constant 0 : index
    %106 = vector.load %arg2[%c4, %c0_58, %c0_59] : memref<8x8x128xf32, #tpu.memory_space<vmem>>, vector<1x8x128xf32>
    %107 = vector.shape_cast %106 : vector<1x8x128xf32> to vector<8x128xf32>
    %108 = vector.shape_cast %105 : vector<8x128xf32> to vector<1x8x128xf32>
    tpu.vector_store %arg2[%c4, %c0_58, %c0_59], %108 {strides = array<i32>} : memref<8x8x128xf32, #tpu.memory_space<vmem>>, vector<1x8x128xf32>,
    %c0_60 = arith.constant 0 : index
    %c0_61 = arith.constant 0 : index
    %109 = vector.load %arg1[%c0_60, %c0_61] : memref<408x128xf32, #tpu.memory_space<vmem>>, vector<128x128xf32>
    %cst_62 = arith.constant dense<0.000000e+00> : vector<8x128xf32>
    %110 = tpu.matmul %105, %109, %cst_62 {dimension_numbers = #tpu.dot_dimension_numbers<[1], [0], [0], [1], [0, 0, 1, 1], [], []>} : vector<8x128xf32>, vector<128x128xf32>, vector<8x128xf32> -> vector<8x128xf32>
    %111 = arith.addf %110, %2 : vector<8x128xf32>
    %112 = math.tanh %111 : vector<8x128xf32>
    %c136_63 = arith.constant 136 : index
    %c0_64 = arith.constant 0 : index
    %113 = vector.load %arg1[%c136_63, %c0_64] : memref<408x128xf32, #tpu.memory_space<vmem>>, vector<128x128xf32>
    %cst_65 = arith.constant dense<0.000000e+00> : vector<8x128xf32>
    %114 = tpu.matmul %112, %113, %cst_65 {dimension_numbers = #tpu.dot_dimension_numbers<[1], [0], [0], [1], [0, 0, 1, 1], [], []>} : vector<8x128xf32>, vector<128x128xf32>, vector<8x128xf32> -> vector<8x128xf32>
    %115 = arith.addf %114, %5 : vector<8x128xf32>
    %cst_66 = arith.constant 0.000000e+00 : f32
    %116 = vector.broadcast %cst_66 : f32 to vector<8x128xf32>
    %117 = arith.maximumf %115, %116 : vector<8x128xf32>
    %118 = math.absf %115 : vector<8x128xf32>
    %cst_67 = arith.constant 0.000000e+00 : f32
    %119 = vector.broadcast %cst_67 : f32 to vector<8x128xf32>
    %120 = arith.subf %119, %118 : vector<8x128xf32>
    %121 = math.exp %120 : vector<8x128xf32>
    %cst_68 = arith.constant 1.000000e+00 : f32
    %122 = vector.broadcast %cst_68 : f32 to vector<8x128xf32>
    %123 = arith.addf %122, %121 : vector<8x128xf32>
    %124 = math.log %123 : vector<8x128xf32>
    %125 = arith.addf %117, %124 : vector<8x128xf32>
    %c272_69 = arith.constant 272 : index
    %c0_70 = arith.constant 0 : index
    %126 = vector.load %arg1[%c272_69, %c0_70] : memref<408x128xf32, #tpu.memory_space<vmem>>, vector<128x128xf32>
    %cst_71 = arith.constant dense<0.000000e+00> : vector<8x128xf32>
    %127 = tpu.matmul %125, %126, %cst_71 {dimension_numbers = #tpu.dot_dimension_numbers<[1], [0], [0], [1], [0, 0, 1, 1], [], []>} : vector<8x128xf32>, vector<128x128xf32>, vector<8x128xf32> -> vector<8x128xf32>
    %128 = arith.addf %127, %8 : vector<8x128xf32>
    %129 = arith.addf %105, %128 : vector<8x128xf32>
    %c5 = arith.constant 5 : index
    %c0_72 = arith.constant 0 : index
    %c0_73 = arith.constant 0 : index
    %130 = vector.load %arg2[%c5, %c0_72, %c0_73] : memref<8x8x128xf32, #tpu.memory_space<vmem>>, vector<1x8x128xf32>
    %131 = vector.shape_cast %130 : vector<1x8x128xf32> to vector<8x128xf32>
    %132 = vector.shape_cast %129 : vector<8x128xf32> to vector<1x8x128xf32>
    tpu.vector_store %arg2[%c5, %c0_72, %c0_73], %132 {strides = array<i32>} : memref<8x8x128xf32, #tpu.memory_space<vmem>>, vector<1x8x128xf32>,
    %c0_74 = arith.constant 0 : index
    %c0_75 = arith.constant 0 : index
    %133 = vector.load %arg1[%c0_74, %c0_75] : memref<408x128xf32, #tpu.memory_space<vmem>>, vector<128x128xf32>
    %cst_76 = arith.constant dense<0.000000e+00> : vector<8x128xf32>
    %134 = tpu.matmul %129, %133, %cst_76 {dimension_numbers = #tpu.dot_dimension_numbers<[1], [0], [0], [1], [0, 0, 1, 1], [], []>} : vector<8x128xf32>, vector<128x128xf32>, vector<8x128xf32> -> vector<8x128xf32>
    %135 = arith.addf %134, %2 : vector<8x128xf32>
    %136 = math.tanh %135 : vector<8x128xf32>
    %c136_77 = arith.constant 136 : index
    %c0_78 = arith.constant 0 : index
    %137 = vector.load %arg1[%c136_77, %c0_78] : memref<408x128xf32, #tpu.memory_space<vmem>>, vector<128x128xf32>
    %cst_79 = arith.constant dense<0.000000e+00> : vector<8x128xf32>
    %138 = tpu.matmul %136, %137, %cst_79 {dimension_numbers = #tpu.dot_dimension_numbers<[1], [0], [0], [1], [0, 0, 1, 1], [], []>} : vector<8x128xf32>, vector<128x128xf32>, vector<8x128xf32> -> vector<8x128xf32>
    %139 = arith.addf %138, %5 : vector<8x128xf32>
    %cst_80 = arith.constant 0.000000e+00 : f32
    %140 = vector.broadcast %cst_80 : f32 to vector<8x128xf32>
    %141 = arith.maximumf %139, %140 : vector<8x128xf32>
    %142 = math.absf %139 : vector<8x128xf32>
    %cst_81 = arith.constant 0.000000e+00 : f32
    %143 = vector.broadcast %cst_81 : f32 to vector<8x128xf32>
    %144 = arith.subf %143, %142 : vector<8x128xf32>
    %145 = math.exp %144 : vector<8x128xf32>
    %cst_82 = arith.constant 1.000000e+00 : f32
    %146 = vector.broadcast %cst_82 : f32 to vector<8x128xf32>
    %147 = arith.addf %146, %145 : vector<8x128xf32>
    %148 = math.log %147 : vector<8x128xf32>
    %149 = arith.addf %141, %148 : vector<8x128xf32>
    %c272_83 = arith.constant 272 : index
    %c0_84 = arith.constant 0 : index
    %150 = vector.load %arg1[%c272_83, %c0_84] : memref<408x128xf32, #tpu.memory_space<vmem>>, vector<128x128xf32>
    %cst_85 = arith.constant dense<0.000000e+00> : vector<8x128xf32>
    %151 = tpu.matmul %149, %150, %cst_85 {dimension_numbers = #tpu.dot_dimension_numbers<[1], [0], [0], [1], [0, 0, 1, 1], [], []>} : vector<8x128xf32>, vector<128x128xf32>, vector<8x128xf32> -> vector<8x128xf32>
    %152 = arith.addf %151, %8 : vector<8x128xf32>
    %153 = arith.addf %129, %152 : vector<8x128xf32>
    %c6 = arith.constant 6 : index
    %c0_86 = arith.constant 0 : index
    %c0_87 = arith.constant 0 : index
    %154 = vector.load %arg2[%c6, %c0_86, %c0_87] : memref<8x8x128xf32, #tpu.memory_space<vmem>>, vector<1x8x128xf32>
    %155 = vector.shape_cast %154 : vector<1x8x128xf32> to vector<8x128xf32>
    %156 = vector.shape_cast %153 : vector<8x128xf32> to vector<1x8x128xf32>
    tpu.vector_store %arg2[%c6, %c0_86, %c0_87], %156 {strides = array<i32>} : memref<8x8x128xf32, #tpu.memory_space<vmem>>, vector<1x8x128xf32>,
    %c0_88 = arith.constant 0 : index
    %c0_89 = arith.constant 0 : index
    %157 = vector.load %arg1[%c0_88, %c0_89] : memref<408x128xf32, #tpu.memory_space<vmem>>, vector<128x128xf32>
    %cst_90 = arith.constant dense<0.000000e+00> : vector<8x128xf32>
    %158 = tpu.matmul %153, %157, %cst_90 {dimension_numbers = #tpu.dot_dimension_numbers<[1], [0], [0], [1], [0, 0, 1, 1], [], []>} : vector<8x128xf32>, vector<128x128xf32>, vector<8x128xf32> -> vector<8x128xf32>
    %159 = arith.addf %158, %2 : vector<8x128xf32>
    %160 = math.tanh %159 : vector<8x128xf32>
    %c136_91 = arith.constant 136 : index
    %c0_92 = arith.constant 0 : index
    %161 = vector.load %arg1[%c136_91, %c0_92] : memref<408x128xf32, #tpu.memory_space<vmem>>, vector<128x128xf32>
    %cst_93 = arith.constant dense<0.000000e+00> : vector<8x128xf32>
    %162 = tpu.matmul %160, %161, %cst_93 {dimension_numbers = #tpu.dot_dimension_numbers<[1], [0], [0], [1], [0, 0, 1, 1], [], []>} : vector<8x128xf32>, vector<128x128xf32>, vector<8x128xf32> -> vector<8x128xf32>
    %163 = arith.addf %162, %5 : vector<8x128xf32>
    %cst_94 = arith.constant 0.000000e+00 : f32
    %164 = vector.broadcast %cst_94 : f32 to vector<8x128xf32>
    %165 = arith.maximumf %163, %164 : vector<8x128xf32>
    %166 = math.absf %163 : vector<8x128xf32>
    %cst_95 = arith.constant 0.000000e+00 : f32
    %167 = vector.broadcast %cst_95 : f32 to vector<8x128xf32>
    %168 = arith.subf %167, %166 : vector<8x128xf32>
    %169 = math.exp %168 : vector<8x128xf32>
    %cst_96 = arith.constant 1.000000e+00 : f32
    %170 = vector.broadcast %cst_96 : f32 to vector<8x128xf32>
    %171 = arith.addf %170, %169 : vector<8x128xf32>
    %172 = math.log %171 : vector<8x128xf32>
    %173 = arith.addf %165, %172 : vector<8x128xf32>
    %c272_97 = arith.constant 272 : index
    %c0_98 = arith.constant 0 : index
    %174 = vector.load %arg1[%c272_97, %c0_98] : memref<408x128xf32, #tpu.memory_space<vmem>>, vector<128x128xf32>
    %cst_99 = arith.constant dense<0.000000e+00> : vector<8x128xf32>
    %175 = tpu.matmul %173, %174, %cst_99 {dimension_numbers = #tpu.dot_dimension_numbers<[1], [0], [0], [1], [0, 0, 1, 1], [], []>} : vector<8x128xf32>, vector<128x128xf32>, vector<8x128xf32> -> vector<8x128xf32>
    %176 = arith.addf %175, %8 : vector<8x128xf32>
    %177 = arith.addf %153, %176 : vector<8x128xf32>
    %c7 = arith.constant 7 : index
    %c0_100 = arith.constant 0 : index
    %c0_101 = arith.constant 0 : index
    %178 = vector.load %arg2[%c7, %c0_100, %c0_101] : memref<8x8x128xf32, #tpu.memory_space<vmem>>, vector<1x8x128xf32>
    %179 = vector.shape_cast %178 : vector<1x8x128xf32> to vector<8x128xf32>
    %180 = vector.shape_cast %177 : vector<8x128xf32> to vector<1x8x128xf32>
    tpu.vector_store %arg2[%c7, %c0_100, %c0_101], %180 {strides = array<i32>} : memref<8x8x128xf32, #tpu.memory_space<vmem>>, vector<1x8x128xf32>,
    return
  }
}

</mosaic_0001>

<llo_original>
// kernel: forward.1
$region0: #{forward.1}
  #allocation0 [shape = 'u32[]', space=smem, size = 0x4, offset = 0x4, fixed_abs, tag = 'smem constant byte address 0x4 - core index']
  #allocation1 [shape = 'u32[144,128]{1,0:T(1,128)}', space=vmem, size = 0x12000, scoped, tag = 'internal scratch']
  %s0 = inlined_call_operand.vmem [shape: f32[8,128], index: 0, kind: input, shape index: {}]
  %s1 = inlined_call_operand.vmem [shape: f32[408,128], index: 1, kind: input, shape index: {}]
  %s2 = inlined_call_operand.hbm [shape: f32[8,8,128], index: 2, kind: output, shape index: {}]
  %s3 = sld [smem:[#allocation0]]
  $region18: #{forward.1} parent=0
    _
  %s5 = ssub.s32 1, %s3
  %s6 = scalar_select 0, %s5, %s3
  $region1: #{forward.1} parent=0
    #allocation2 [shape = 'u8[32768]{0}', space=vmem, size = 0x8000, scoped, tag = 'output window, operand 0, single buffered']
    #allocation3 [shape = 's32[1]{0}', space=sflag, size = 0x4, scoped, tag = 'scoped memory for forward.1']
    %7 = vsyncpa [#allocation3], 0
    // Predicated region
    $region2: #{forward.1} parent=1 // pred_check
      _
    $region3: #{forward.1} parent=1 // pred_check_branch
      %9 = sbr.rel (0) target = $region5
    $region4: #{forward.1} parent=1 // pred_region
      _
    $region5: #{forward.1} parent=1 // pred_fallthru
      _
    // Predicated region
    $region6: #{forward.1} parent=1 // pred_check
      _
    $region7: #{forward.1} parent=1 // pred_check_branch
      %11 = sbr.rel (0) target = $region9
    $region8: #{forward.1} parent=1 // pred_region
      _
    $region9: #{forward.1} parent=1 // pred_fallthru
      _
    %v12 = vld [vmem:[%s1 + $0x80] sm:$0x1]
    %v13 = vlaneseq
    %v14 = vshrl.u32 %v13, 7
    %v15 = vsub.s32 0, %v14
    %v16 = vrot.slane %v12, %v15
    %v17 = vld [vmem:[%s1 + $0x108] sm:$0x1]
    %v18 = vlaneseq
    %v19 = vshrl.u32 %v18, 7
    %v20 = vsub.s32 0, %v19
    %v21 = vrot.slane %v17, %v20
    %v22 = vld [vmem:[%s1 + $0x190] sm:$0x1]
    %v23 = vlaneseq
    %v24 = vshrl.u32 %v23, 7
    %v25 = vsub.s32 0, %v24
    %v26 = vrot.slane %v22, %v25
    %v27 = vld [vmem:[%s0] sm:$0xff]
    %28 = vst [vmem:[#allocation2] sm:$0xff] %v27
    %v29 = vld [vmem:[%s1] sm:$0xff]
    %v30 = vld [vmem:[%s1 + $0x8] sm:$0xff]
    %v31 = vld [vmem:[%s1 + $0x10] sm:$0xff]
    %v32 = vld [vmem:[%s1 + $0x18] sm:$0xff]
    %v33 = vld [vmem:[%s1 + $0x20] sm:$0xff]
    %v34 = vld [vmem:[%s1 + $0x28] sm:$0xff]
    %v35 = vld [vmem:[%s1 + $0x30] sm:$0xff]
    %v36 = vld [vmem:[%s1 + $0x38] sm:$0xff]
    %v37 = vld [vmem:[%s1 + $0x40] sm:$0xff]
    %v38 = vld [vmem:[%s1 + $0x48] sm:$0xff]
    %v39 = vld [vmem:[%s1 + $0x50] sm:$0xff]
    %v40 = vld [vmem:[%s1 + $0x58] sm:$0xff]
    %v41 = vld [vmem:[%s1 + $0x60] sm:$0xff]
    %v42 = vld [vmem:[%s1 + $0x68] sm:$0xff]
    %v43 = vld [vmem:[%s1 + $0x70] sm:$0xff]
    %v44 = vld [vmem:[%s1 + $0x78] sm:$0xff]
    %45 = vmatprep.subr.mxu0 0.0
    %46 = vmatpush1.msra.mxu0 %v29
    %47 = vmatprep.subr.mxu0 0.0
    %48 = vmatpush1.msra.mxu0 %v30
    %49 = vmatprep.subr.mxu0 0.0
    %50 = vmatpush1.msra.mxu0 %v31
    %51 = vmatprep.subr.mxu0 0.0
    %52 = vmatpush1.msra.mxu0 %v32
    %53 = vmatprep.subr.mxu0 0.0
    %54 = vmatpush1.msra.mxu0 %v33
    %55 = vmatprep.subr.mxu0 0.0
    %56 = vmatpush1.msra.mxu0 %v34
    %57 = vmatprep.subr.mxu0 0.0
    %58 = vmatpush1.msra.mxu0 %v35
    %59 = vmatprep.subr.mxu0 0.0
    %60 = vmatpush1.msra.mxu0 %v36
    %61 = vmatprep.subr.mxu0 0.0
    %62 = vmatpush1.msra.mxu0 %v37
    %63 = vmatprep.subr.mxu0 0.0
    %64 = vmatpush1.msra.mxu0 %v38
    %65 = vmatprep.subr.mxu0 0.0
    %66 = vmatpush1.msra.mxu0 %v39
    %67 = vmatprep.subr.mxu0 0.0
    %68 = vmatpush1.msra.mxu0 %v40
    %69 = vmatprep.subr.mxu0 0.0
    %70 = vmatpush1.msra.mxu0 %v41
    %71 = vmatprep.subr.mxu0 0.0
    %72 = vmatpush1.msra.mxu0 %v42
    %73 = vmatprep.subr.mxu0 0.0
    %74 = vmatpush1.msra.mxu0 %v43
    %75 = vmatprep.subr.mxu0 0.0
    %76 = vmatpush1.msra.mxu0 %v44
    %77 = vmatprep.subr.mxu0 0.0
    %78 = vmatpush1.msra.mxu0 0.0
    %79 = vmatprep.subr.mxu0 0.0
    %80 = vmatpush1.msra.mxu0 0.0
    %81 = vmatprep.subr.mxu0 0.0
    %82 = vmatpush1.msra.mxu0 0.0
    %83 = vmatprep.subr.mxu0 0.0
    %84 = vmatpush1.msra.mxu0 0.0
    %85 = vmatprep.subr.mxu0 0.0
    %86 = vmatpush1.msra.mxu0 0.0
    %87 = vmatprep.subr.mxu0 0.0
    %88 = vmatpush1.msra.mxu0 0.0
    %89 = vmatprep.subr.mxu0 0.0
    %90 = vmatpush1.msra.mxu0 0.0
    %91 = vmatprep.subr.mxu0 0.0
    %92 = vmatpush1.msra.mxu0 0.0
    %93 = vmatprep.subr.mxu0 0.0
    %94 = vmatpush1.msra.mxu0 0.0
    %95 = vmatprep.subr.mxu0 0.0
    %96 = vmatpush1.msra.mxu0 0.0
    %97 = vmatprep.subr.mxu0 0.0
    %98 = vmatpush1.msra.mxu0 0.0
    %99 = vmatprep.subr.mxu0 0.0
    %100 = vmatpush1.msra.mxu0 0.0
    %101 = vmatprep.subr.mxu0 0.0
    %102 = vmatpush1.msra.mxu0 0.0
    %103 = vmatprep.subr.mxu0 0.0
    %104 = vmatpush1.msra.mxu0 0.0
    %105 = vmatprep.subr.mxu0 0.0
    %106 = vmatpush1.msra.mxu0 0.0
    %107 = vmatprep.subr.mxu0 0.0
    %108 = vmatpush1.msra.mxu0 0.0
    %109 = vmatprep.mubr.f32.mxu0 0.0
    %110 = vmatmul.mubr.f32.gmra.mrb[0].mxu0 %v27
    %v111 = vpop.f32.mrb[0].mxu0
    %v112 = vadd.f32 %v16, %v111
    %v113 = vpop.f32.mrb[0].mxu0
    %114 = vdwg.mxu0
    %v115 = vtanh.pop %v112
    %v116 = vld [vmem:[%s1 + $0x88] sm:$0xff]
    %v117 = vld [vmem:[%s1 + $0x90] sm:$0xff]
    %v118 = vld [vmem:[%s1 + $0x98] sm:$0xff]
    %v119 = vld [vmem:[%s1 + $0xa0] sm:$0xff]
    %v120 = vld [vmem:[%s1 + $0xa8] sm:$0xff]
    %v121 = vld [vmem:[%s1 + $0xb0] sm:$0xff]
    %v122 = vld [vmem:[%s1 + $0xb8] sm:$0xff]
    %v123 = vld [vmem:[%s1 + $0xc0] sm:$0xff]
    %v124 = vld [vmem:[%s1 + $0xc8] sm:$0xff]
    %v125 = vld [vmem:[%s1 + $0xd0] sm:$0xff]
    %v126 = vld [vmem:[%s1 + $0xd8] sm:$0xff]
    %v127 = vld [vmem:[%s1 + $0xe0] sm:$0xff]
    %v128 = vld [vmem:[%s1 + $0xe8] sm:$0xff]
    %v129 = vld [vmem:[%s1 + $0xf0] sm:$0xff]
    %v130 = vld [vmem:[%s1 + $0xf8] sm:$0xff]
    %v131 = vld [vmem:[%s1 + $0x100] sm:$0xff]
    %132 = vmatprep.subr.mxu0 0.0
    %133 = vmatpush1.msra.mxu0 %v116
    %134 = vmatprep.subr.mxu0 0.0
    %135 = vmatpush1.msra.mxu0 %v117
    %136 = vmatprep.subr.mxu0 0.0
    %137 = vmatpush1.msra.mxu0 %v118
    %138 = vmatprep.subr.mxu0 0.0
    %139 = vmatpush1.msra.mxu0 %v119
    %140 = vmatprep.subr.mxu0 0.0
    %141 = vmatpush1.msra.mxu0 %v120
    %142 = vmatprep.subr.mxu0 0.0
    %143 = vmatpush1.msra.mxu0 %v121
    %144 = vmatprep.subr.mxu0 0.0
    %145 = vmatpush1.msra.mxu0 %v122
    %146 = vmatprep.subr.mxu0 0.0
    %147 = vmatpush1.msra.mxu0 %v123
    %148 = vmatprep.subr.mxu0 0.0
    %149 = vmatpush1.msra.mxu0 %v124
    %150 = vmatprep.subr.mxu0 0.0
    %151 = vmatpush1.msra.mxu0 %v125
    %152 = vmatprep.subr.mxu0 0.0
    %153 = vmatpush1.msra.mxu0 %v126
    %154 = vmatprep.subr.mxu0 0.0
    %155 = vmatpush1.msra.mxu0 %v127
    %156 = vmatprep.subr.mxu0 0.0
    %157 = vmatpush1.msra.mxu0 %v128
    %158 = vmatprep.subr.mxu0 0.0
    %159 = vmatpush1.msra.mxu0 %v129
    %160 = vmatprep.subr.mxu0 0.0
    %161 = vmatpush1.msra.mxu0 %v130
    %162 = vmatprep.subr.mxu0 0.0
    %163 = vmatpush1.msra.mxu0 %v131
    %164 = vmatprep.subr.mxu0 0.0
    %165 = vmatpush1.msra.mxu0 0.0
    %166 = vmatprep.subr.mxu0 0.0
    %167 = vmatpush1.msra.mxu0 0.0
    %168 = vmatprep.subr.mxu0 0.0
    %169 = vmatpush1.msra.mxu0 0.0
    %170 = vmatprep.subr.mxu0 0.0
    %171 = vmatpush1.msra.mxu0 0.0
    %172 = vmatprep.subr.mxu0 0.0
    %173 = vmatpush1.msra.mxu0 0.0
    %174 = vmatprep.subr.mxu0 0.0
    %175 = vmatpush1.msra.mxu0 0.0
    %176 = vmatprep.subr.mxu0 0.0
    %177 = vmatpush1.msra.mxu0 0.0
    %178 = vmatprep.subr.mxu0 0.0
    %179 = vmatpush1.msra.mxu0 0.0
    %180 = vmatprep.subr.mxu0 0.0
    %181 = vmatpush1.msra.mxu0 0.0
    %182 = vmatprep.subr.mxu0 0.0
    %183 = vmatpush1.msra.mxu0 0.0
    %184 = vmatprep.subr.mxu0 0.0
    %185 = vmatpush1.msra.mxu0 0.0
    %186 = vmatprep.subr.mxu0 0.0
    %187 = vmatpush1.msra.mxu0 0.0
    %188 = vmatprep.subr.mxu0 0.0
    %189 = vmatpush1.msra.mxu0 0.0
    %190 = vmatprep.subr.mxu0 0.0
    %191 = vmatpush1.msra.mxu0 0.0
    %192 = vmatprep.subr.mxu0 0.0
    %193 = vmatpush1.msra.mxu0 0.0
    %194 = vmatprep.subr.mxu0 0.0
    %195 = vmatpush1.msra.mxu0 0.0
    %196 = vmatprep.mubr.f32.mxu0 0.0
    %197 = vmatmul.mubr.f32.gmra.mrb[0].mxu0 %v115
    %v198 = vpop.f32.mrb[0].mxu0
    %v199 = vadd.f32 %v21, %v198
    %v200 = vpop.f32.mrb[0].mxu0
    %201 = vdwg.mxu0
    %v202 = vmax.f32 %v199, 0.0
    %v203 = vand.u32 2147483647, %v199
    %v204 = vsub.f32 0.0, %v203
    %v205 = vmul.f32 %v204, 1.442695
    %v206 = vpow.pop %v205
    %v207 = vadd.f32 %v206, 1.0
    %v208 = vlog2.pop %v207
    %v209 = vmul.f32 %v208, 0.6931472
    %v210 = vadd.f32 %v202, %v209
    %v211 = vld [vmem:[%s1 + $0x110] sm:$0xff]
    %v212 = vld [vmem:[%s1 + $0x118] sm:$0xff]
    %v213 = vld [vmem:[%s1 + $0x120] sm:$0xff]
    %v214 = vld [vmem:[%s1 + $0x128] sm:$0xff]
    %v215 = vld [vmem:[%s1 + $0x130] sm:$0xff]
    %v216 = vld [vmem:[%s1 + $0x138] sm:$0xff]
    %v217 = vld [vmem:[%s1 + $0x140] sm:$0xff]
    %v218 = vld [vmem:[%s1 + $0x148] sm:$0xff]
    %v219 = vld [vmem:[%s1 + $0x150] sm:$0xff]
    %v220 = vld [vmem:[%s1 + $0x158] sm:$0xff]
    %v221 = vld [vmem:[%s1 + $0x160] sm:$0xff]
    %v222 = vld [vmem:[%s1 + $0x168] sm:$0xff]
    %v223 = vld [vmem:[%s1 + $0x170] sm:$0xff]
    %v224 = vld [vmem:[%s1 + $0x178] sm:$0xff]
    %v225 = vld [vmem:[%s1 + $0x180] sm:$0xff]
    %v226 = vld [vmem:[%s1 + $0x188] sm:$0xff]
    %227 = vmatprep.subr.mxu0 0.0
    %228 = vmatpush1.msra.mxu0 %v211
    %229 = vmatprep.subr.mxu0 0.0
    %230 = vmatpush1.msra.mxu0 %v212
    %231 = vmatprep.subr.mxu0 0.0
    %232 = vmatpush1.msra.mxu0 %v213
    %233 = vmatprep.subr.mxu0 0.0
    %234 = vmatpush1.msra.mxu0 %v214
    %235 = vmatprep.subr.mxu0 0.0
    %236 = vmatpush1.msra.mxu0 %v215
    %237 = vmatprep.subr.mxu0 0.0
    %238 = vmatpush1.msra.mxu0 %v216
    %239 = vmatprep.subr.mxu0 0.0
    %240 = vmatpush1.msra.mxu0 %v217
    %241 = vmatprep.subr.mxu0 0.0
    %242 = vmatpush1.msra.mxu0 %v218
    %243 = vmatprep.subr.mxu0 0.0
    %244 = vmatpush1.msra.mxu0 %v219
    %245 = vmatprep.subr.mxu0 0.0
    %246 = vmatpush1.msra.mxu0 %v220
    %247 = vmatprep.subr.mxu0 0.0
    %248 = vmatpush1.msra.mxu0 %v221
    %249 = vmatprep.subr.mxu0 0.0
    %250 = vmatpush1.msra.mxu0 %v222
    %251 = vmatprep.subr.mxu0 0.0
    %252 = vmatpush1.msra.mxu0 %v223
    %253 = vmatprep.subr.mxu0 0.0
    %254 = vmatpush1.msra.mxu0 %v224
    %255 = vmatprep.subr.mxu0 0.0
    %256 = vmatpush1.msra.mxu0 %v225
    %257 = vmatprep.subr.mxu0 0.0
    %258 = vmatpush1.msra.mxu0 %v226
    %259 = vmatprep.subr.mxu0 0.0
    %260 = vmatpush1.msra.mxu0 0.0
    %261 = vmatprep.subr.mxu0 0.0
    %262 = vmatpush1.msra.mxu0 0.0
    %263 = vmatprep.subr.mxu0 0.0
    %264 = vmatpush1.msra.mxu0 0.0
    %265 = vmatprep.subr.mxu0 0.0
    %266 = vmatpush1.msra.mxu0 0.0
    %267 = vmatprep.subr.mxu0 0.0
    %268 = vmatpush1.msra.mxu0 0.0
    %269 = vmatprep.subr.mxu0 0.0
    %270 = vmatpush1.msra.mxu0 0.0
    %271 = vmatprep.subr.mxu0 0.0
    %272 = vmatpush1.msra.mxu0 0.0
    %273 = vmatprep.subr.mxu0 0.0
    %274 = vmatpush1.msra.mxu0 0.0
    %275 = vmatprep.subr.mxu0 0.0
    %276 = vmatpush1.msra.mxu0 0.0
    %277 = vmatprep.subr.mxu0 0.0
    %278 = vmatpush1.msra.mxu0 0.0
    %279 = vmatprep.subr.mxu0 0.0
    %280 = vmatpush1.msra.mxu0 0.0
    %281 = vmatprep.subr.mxu0 0.0
    %282 = vmatpush1.msra.mxu0 0.0
    %283 = vmatprep.subr.mxu0 0.0
    %284 = vmatpush1.msra.mxu0 0.0
    %285 = vmatprep.subr.mxu0 0.0
    %286 = vmatpush1.msra.mxu0 0.0
    %287 = vmatprep.subr.mxu0 0.0
    %288 = vmatpush1.msra.mxu0 0.0
    %289 = vmatprep.subr.mxu0 0.0
    %290 = vmatpush1.msra.mxu0 0.0
    %291 = vmatprep.mubr.f32.mxu0 0.0
    %292 = vmatmul.mubr.f32.gmra.mrb[0].mxu0 %v210
    %v293 = vpop.f32.mrb[0].mxu0
    %v294 = vadd.f32 %v26, %v293
    %v295 = vpop.f32.mrb[0].mxu0
    %296 = vdwg.mxu0
    %v297 = vadd.f32 %v27, %v294
    %s298 = scalar_lea.vmem [#allocation2], 8
    %299 = vst [vmem:[%s298] sm:$0xff] %v297
    %v300 = vld [vmem:[%s1] sm:$0xff]
    %v301 = vld [vmem:[%s1 + $0x8] sm:$0xff]
    %v302 = vld [vmem:[%s1 + $0x10] sm:$0xff]
    %v303 = vld [vmem:[%s1 + $0x18] sm:$0xff]
    %v304 = vld [vmem:[%s1 + $0x20] sm:$0xff]
    %v305 = vld [vmem:[%s1 + $0x28] sm:$0xff]
    %v306 = vld [vmem:[%s1 + $0x30] sm:$0xff]
    %v307 = vld [vmem:[%s1 + $0x38] sm:$0xff]
    %v308 = vld [vmem:[%s1 + $0x40] sm:$0xff]
    %v309 = vld [vmem:[%s1 + $0x48] sm:$0xff]
    %v310 = vld [vmem:[%s1 + $0x50] sm:$0xff]
    %v311 = vld [vmem:[%s1 + $0x58] sm:$0xff]
    %v312 = vld [vmem:[%s1 + $0x60] sm:$0xff]
    %v313 = vld [vmem:[%s1 + $0x68] sm:$0xff]
    %v314 = vld [vmem:[%s1 + $0x70] sm:$0xff]
    %v315 = vld [vmem:[%s1 + $0x78] sm:$0xff]
    %316 = vmatprep.subr.mxu0 0.0
    %317 = vmatpush1.msra.mxu0 %v300
    %318 = vmatprep.subr.mxu0 0.0
    %319 = vmatpush1.msra.mxu0 %v301
    %320 = vmatprep.subr.mxu0 0.0
    %321 = vmatpush1.msra.mxu0 %v302
    %322 = vmatprep.subr.mxu0 0.0
    %323 = vmatpush1.msra.mxu0 %v303
    %324 = vmatprep.subr.mxu0 0.0
    %325 = vmatpush1.msra.mxu0 %v304
    %326 = vmatprep.subr.mxu0 0.0
    %327 = vmatpush1.msra.mxu0 %v305
    %328 = vmatprep.subr.mxu0 0.0
    %329 = vmatpush1.msra.mxu0 %v306
    %330 = vmatprep.subr.mxu0 0.0
    %331 = vmatpush1.msra.mxu0 %v307
    %332 = vmatprep.subr.mxu0 0.0
    %333 = vmatpush1.msra.mxu0 %v308
    %334 = vmatprep.subr.mxu0 0.0
    %335 = vmatpush1.msra.mxu0 %v309
    %336 = vmatprep.subr.mxu0 0.0
    %337 = vmatpush1.msra.mxu0 %v310
    %338 = vmatprep.subr.mxu0 0.0
    %339 = vmatpush1.msra.mxu0 %v311
    %340 = vmatprep.subr.mxu0 0.0
    %341 = vmatpush1.msra.mxu0 %v312
    %342 = vmatprep.subr.mxu0 0.0
    %343 = vmatpush1.msra.mxu0 %v313
    %344 = vmatprep.subr.mxu0 0.0
    %345 = vmatpush1.msra.mxu0 %v314
    %346 = vmatprep.subr.mxu0 0.0
    %347 = vmatpush1.msra.mxu0 %v315
    %348 = vmatprep.subr.mxu0 0.0
    %349 = vmatpush1.msra.mxu0 0.0
    %350 = vmatprep.subr.mxu0 0.0
    %351 = vmatpush1.msra.mxu0 0.0
    %352 = vmatprep.subr.mxu0 0.0
    %353 = vmatpush1.msra.mxu0 0.0
    %354 = vmatprep.subr.mxu0 0.0
    %355 = vmatpush1.msra.mxu0 0.0
    %356 = vmatprep.subr.mxu0 0.0
    %357 = vmatpush1.msra.mxu0 0.0
    %358 = vmatprep.subr.mxu0 0.0
    %359 = vmatpush1.msra.mxu0 0.0
    %360 = vmatprep.subr.mxu0 0.0
    %361 = vmatpush1.msra.mxu0 0.0
    %362 = vmatprep.subr.mxu0 0.0
    %363 = vmatpush1.msra.mxu0 0.0
    %364 = vmatprep.subr.mxu0 0.0
    %365 = vmatpush1.msra.mxu0 0.0
    %366 = vmatprep.subr.mxu0 0.0
    %367 = vmatpush1.msra.mxu0 0.0
    %368 = vmatprep.subr.mxu0 0.0
    %369 = vmatpush1.msra.mxu0 0.0
    %370 = vmatprep.subr.mxu0 0.0
    %371 = vmatpush1.msra.mxu0 0.0
    %372 = vmatprep.subr.mxu0 0.0
    %373 = vmatpush1.msra.mxu0 0.0
    %374 = vmatprep.subr.mxu0 0.0
    %375 = vmatpush1.msra.mxu0 0.0
    %376 = vmatprep.subr.mxu0 0.0
    %377 = vmatpush1.msra.mxu0 0.0
    %378 = vmatprep.subr.mxu0 0.0
    %379 = vmatpush1.msra.mxu0 0.0
    %380 = vmatprep.mubr.f32.mxu0 0.0
    %381 = vmatmul.mubr.f32.gmra.mrb[0].mxu0 %v297
    %v382 = vpop.f32.mrb[0].mxu0
    %v383 = vadd.f32 %v16, %v382
    %v384 = vpop.f32.mrb[0].mxu0
    %385 = vdwg.mxu0
    %v386 = vtanh.pop %v383
    %v387 = vld [vmem:[%s1 + $0x88] sm:$0xff]
    %v388 = vld [vmem:[%s1 + $0x90] sm:$0xff]
    %v389 = vld [vmem:[%s1 + $0x98] sm:$0xff]
    %v390 = vld [vmem:[%s1 + $0xa0] sm:$0xff]
    %v391 = vld [vmem:[%s1 + $0xa8] sm:$0xff]
    %v392 = vld [vmem:[%s1 + $0xb0] sm:$0xff]
    %v393 = vld [vmem:[%s1 + $0xb8] sm:$0xff]
    %v394 = vld [vmem:[%s1 + $0xc0] sm:$0xff]
    %v395 = vld [vmem:[%s1 + $0xc8] sm:$0xff]
    %v396 = vld [vmem:[%s1 + $0xd0] sm:$0xff]
    %v397 = vld [vmem:[%s1 + $0xd8] sm:$0xff]
    %v398 = vld [vmem:[%s1 + $0xe0] sm:$0xff]
    %v399 = vld [vmem:[%s1 + $0xe8] sm:$0xff]
    %v400 = vld [vmem:[%s1 + $0xf0] sm:$0xff]
    %v401 = vld [vmem:[%s1 + $0xf8] sm:$0xff]
    %v402 = vld [vmem:[%s1 + $0x100] sm:$0xff]
    %403 = vmatprep.subr.mxu0 0.0
    %404 = vmatpush1.msra.mxu0 %v387
    %405 = vmatprep.subr.mxu0 0.0
    %406 = vmatpush1.msra.mxu0 %v388
    %407 = vmatprep.subr.mxu0 0.0
    %408 = vmatpush1.msra.mxu0 %v389
    %409 = vmatprep.subr.mxu0 0.0
    %410 = vmatpush1.msra.mxu0 %v390
    %411 = vmatprep.subr.mxu0 0.0
    %412 = vmatpush1.msra.mxu0 %v391
    %413 = vmatprep.subr.mxu0 0.0
    %414 = vmatpush1.msra.mxu0 %v392
    %415 = vmatprep.subr.mxu0 0.0
    %416 = vmatpush1.msra.mxu0 %v393
    %417 = vmatprep.subr.mxu0 0.0
    %418 = vmatpush1.msra.mxu0 %v394
    %419 = vmatprep.subr.mxu0 0.0
    %420 = vmatpush1.msra.mxu0 %v395
    %421 = vmatprep.subr.mxu0 0.0
    %422 = vmatpush1.msra.mxu0 %v396
    %423 = vmatprep.subr.mxu0 0.0
    %424 = vmatpush1.msra.mxu0 %v397
    %425 = vmatprep.subr.mxu0 0.0
    %426 = vmatpush1.msra.mxu0 %v398
    %427 = vmatprep.subr.mxu0 0.0
    %428 = vmatpush1.msra.mxu0 %v399
    %429 = vmatprep.subr.mxu0 0.0
    %430 = vmatpush1.msra.mxu0 %v400
    %431 = vmatprep.subr.mxu0 0.0
    %432 = vmatpush1.msra.mxu0 %v401
    %433 = vmatprep.subr.mxu0 0.0
    %434 = vmatpush1.msra.mxu0 %v402
    %435 = vmatprep.subr.mxu0 0.0
    %436 = vmatpush1.msra.mxu0 0.0
    %437 = vmatprep.subr.mxu0 0.0
    %438 = vmatpush1.msra.mxu0 0.0
    %439 = vmatprep.subr.mxu0 0.0
    %440 = vmatpush1.msra.mxu0 0.0
    %441 = vmatprep.subr.mxu0 0.0
    %442 = vmatpush1.msra.mxu0 0.0
    %443 = vmatprep.subr.mxu0 0.0
    %444 = vmatpush1.msra.mxu0 0.0
    %445 = vmatprep.subr.mxu0 0.0
    %446 = vmatpush1.msra.mxu0 0.0
    %447 = vmatprep.subr.mxu0 0.0
    %448 = vmatpush1.msra.mxu0 0.0
    %449 = vmatprep.subr.mxu0 0.0
    %450 = vmatpush1.msra.mxu0 0.0
    %451 = vmatprep.subr.mxu0 0.0
    %452 = vmatpush1.msra.mxu0 0.0
    %453 = vmatprep.subr.mxu0 0.0
    %454 = vmatpush1.msra.mxu0 0.0
    %455 = vmatprep.subr.mxu0 0.0
    %456 = vmatpush1.msra.mxu0 0.0
    %457 = vmatprep.subr.mxu0 0.0
    %458 = vmatpush1.msra.mxu0 0.0
    %459 = vmatprep.subr.mxu0 0.0
    %460 = vmatpush1.msra.mxu0 0.0
    %461 = vmatprep.subr.mxu0 0.0
    %462 = vmatpush1.msra.mxu0 0.0
    %463 = vmatprep.subr.mxu0 0.0
    %464 = vmatpush1.msra.mxu0 0.0
    %465 = vmatprep.subr.mxu0 0.0
    %466 = vmatpush1.msra.mxu0 0.0
    %467 = vmatprep.mubr.f32.mxu0 0.0
    %468 = vmatmul.mubr.f32.gmra.mrb[0].mxu0 %v386
    %v469 = vpop.f32.mrb[0].mxu0
    %v470 = vadd.f32 %v21, %v469
    %v471 = vpop.f32.mrb[0].mxu0
    %472 = vdwg.mxu0
    %v473 = vmax.f32 %v470, 0.0
    %v474 = vand.u32 2147483647, %v470
    %v475 = vsub.f32 0.0, %v474
    %v476 = vmul.f32 %v475, 1.442695
    %v477 = vpow.pop %v476
    %v478 = vadd.f32 %v477, 1.0
    %v479 = vlog2.pop %v478
    %v480 = vmul.f32 %v479, 0.6931472
    %v481 = vadd.f32 %v473, %v480
    %v482 = vld [vmem:[%s1 + $0x110] sm:$0xff]
    %v483 = vld [vmem:[%s1 + $0x118] sm:$0xff]
    %v484 = vld [vmem:[%s1 + $0x120] sm:$0xff]
    %v485 = vld [vmem:[%s1 + $0x128] sm:$0xff]
    %v486 = vld [vmem:[%s1 + $0x130] sm:$0xff]
    %v487 = vld [vmem:[%s1 + $0x138] sm:$0xff]
    %v488 = vld [vmem:[%s1 + $0x140] sm:$0xff]
    %v489 = vld [vmem:[%s1 + $0x148] sm:$0xff]
    %v490 = vld [vmem:[%s1 + $0x150] sm:$0xff]
    %v491 = vld [vmem:[%s1 + $0x158] sm:$0xff]
    %v492 = vld [vmem:[%s1 + $0x160] sm:$0xff]
    %v493 = vld [vmem:[%s1 + $0x168] sm:$0xff]
    %v494 = vld [vmem:[%s1 + $0x170] sm:$0xff]
    %v495 = vld [vmem:[%s1 + $0x178] sm:$0xff]
    %v496 = vld [vmem:[%s1 + $0x180] sm:$0xff]
    %v497 = vld [vmem:[%s1 + $0x188] sm:$0xff]
    %498 = vmatprep.subr.mxu0 0.0
    %499 = vmatpush1.msra.mxu0 %v482
    %500 = vmatprep.subr.mxu0 0.0
    %501 = vmatpush1.msra.mxu0 %v483
    %502 = vmatprep.subr.mxu0 0.0
    %503 = vmatpush1.msra.mxu0 %v484
    %504 = vmatprep.subr.mxu0 0.0
    %505 = vmatpush1.msra.mxu0 %v485
    %506 = vmatprep.subr.mxu0 0.0
    %507 = vmatpush1.msra.mxu0 %v486
    %508 = vmatprep.subr.mxu0 0.0
    %509 = vmatpush1.msra.mxu0 %v487
    %510 = vmatprep.subr.mxu0 0.0
    %511 = vmatpush1.msra.mxu0 %v488
    %512 = vmatprep.subr.mxu0 0.0
    %513 = vmatpush1.msra.mxu0 %v489
    %514 = vmatprep.subr.mxu0 0.0
    %515 = vmatpush1.msra.mxu0 %v490
    %516 = vmatprep.subr.mxu0 0.0
    %517 = vmatpush1.msra.mxu0 %v491
    %518 = vmatprep.subr.mxu0 0.0
    %519 = vmatpush1.msra.mxu0 %v492
    %520 = vmatprep.subr.mxu0 0.0
    %521 = vmatpush1.msra.mxu0 %v493
    %522 = vmatprep.subr.mxu0 0.0
    %523 = vmatpush1.msra.mxu0 %v494
    %524 = vmatprep.subr.mxu0 0.0
    %525 = vmatpush1.msra.mxu0 %v495
    %526 = vmatprep.subr.mxu0 0.0
    %527 = vmatpush1.msra.mxu0 %v496
    %528 = vmatprep.subr.mxu0 0.0
    %529 = vmatpush1.msra.mxu0 %v497
    %530 = vmatprep.subr.mxu0 0.0
    %531 = vmatpush1.msra.mxu0 0.0
    %532 = vmatprep.subr.mxu0 0.0
    %533 = vmatpush1.msra.mxu0 0.0
    %534 = vmatprep.subr.mxu0 0.0
    %535 = vmatpush1.msra.mxu0 0.0
    %536 = vmatprep.subr.mxu0 0.0
    %537 = vmatpush1.msra.mxu0 0.0
    %538 = vmatprep.subr.mxu0 0.0
    %539 = vmatpush1.msra.mxu0 0.0
    %540 = vmatprep.subr.mxu0 0.0
    %541 = vmatpush1.msra.mxu0 0.0
    %542 = vmatprep.subr.mxu0 0.0
    %543 = vmatpush1.msra.mxu0 0.0
    %544 = vmatprep.subr.mxu0 0.0
    %545 = vmatpush1.msra.mxu0 0.0
    %546 = vmatprep.subr.mxu0 0.0
    %547 = vmatpush1.msra.mxu0 0.0
    %548 = vmatprep.subr.mxu0 0.0
    %549 = vmatpush1.msra.mxu0 0.0
    %550 = vmatprep.subr.mxu0 0.0
    %551 = vmatpush1.msra.mxu0 0.0
    %552 = vmatprep.subr.mxu0 0.0
    %553 = vmatpush1.msra.mxu0 0.0
    %554 = vmatprep.subr.mxu0 0.0
    %555 = vmatpush1.msra.mxu0 0.0
    %556 = vmatprep.subr.mxu0 0.0
    %557 = vmatpush1.msra.mxu0 0.0
    %558 = vmatprep.subr.mxu0 0.0
    %559 = vmatpush1.msra.mxu0 0.0
    %560 = vmatprep.subr.mxu0 0.0
    %561 = vmatpush1.msra.mxu0 0.0
    %562 = vmatprep.mubr.f32.mxu0 0.0
    %563 = vmatmul.mubr.f32.gmra.mrb[0].mxu0 %v481
    %v564 = vpop.f32.mrb[0].mxu0
    %v565 = vadd.f32 %v26, %v564
    %v566 = vpop.f32.mrb[0].mxu0
    %567 = vdwg.mxu0
    %v568 = vadd.f32 %v297, %v565
    %s569 = scalar_lea.vmem [#allocation2], 16
    %570 = vst [vmem:[%s569] sm:$0xff] %v568
    %v571 = vld [vmem:[%s1] sm:$0xff]
    %v572 = vld [vmem:[%s1 + $0x8] sm:$0xff]
    %v573 = vld [vmem:[%s1 + $0x10] sm:$0xff]
    %v574 = vld [vmem:[%s1 + $0x18] sm:$0xff]
    %v575 = vld [vmem:[%s1 + $0x20] sm:$0xff]
    %v576 = vld [vmem:[%s1 + $0x28] sm:$0xff]
    %v577 = vld [vmem:[%s1 + $0x30] sm:$0xff]
    %v578 = vld [vmem:[%s1 + $0x38] sm:$0xff]
    %v579 = vld [vmem:[%s1 + $0x40] sm:$0xff]
    %v580 = vld [vmem:[%s1 + $0x48] sm:$0xff]
    %v581 = vld [vmem:[%s1 + $0x50] sm:$0xff]
    %v582 = vld [vmem:[%s1 + $0x58] sm:$0xff]
    %v583 = vld [vmem:[%s1 + $0x60] sm:$0xff]
    %v584 = vld [vmem:[%s1 + $0x68] sm:$0xff]
    %v585 = vld [vmem:[%s1 + $0x70] sm:$0xff]
    %v586 = vld [vmem:[%s1 + $0x78] sm:$0xff]
    %587 = vmatprep.subr.mxu0 0.0
    %588 = vmatpush1.msra.mxu0 %v571
    %589 = vmatprep.subr.mxu0 0.0
    %590 = vmatpush1.msra.mxu0 %v572
    %591 = vmatprep.subr.mxu0 0.0
    %592 = vmatpush1.msra.mxu0 %v573
    %593 = vmatprep.subr.mxu0 0.0
    %594 = vmatpush1.msra.mxu0 %v574
    %595 = vmatprep.subr.mxu0 0.0
    %596 = vmatpush1.msra.mxu0 %v575
    %597 = vmatprep.subr.mxu0 0.0
    %598 = vmatpush1.msra.mxu0 %v576
    %599 = vmatprep.subr.mxu0 0.0
    %600 = vmatpush1.msra.mxu0 %v577
    %601 = vmatprep.subr.mxu0 0.0
    %602 = vmatpush1.msra.mxu0 %v578
    %603 = vmatprep.subr.mxu0 0.0
    %604 = vmatpush1.msra.mxu0 %v579
    %605 = vmatprep.subr.mxu0 0.0
    %606 = vmatpush1.msra.mxu0 %v580
    %607 = vmatprep.subr.mxu0 0.0
    %608 = vmatpush1.msra.mxu0 %v581
    %609 = vmatprep.subr.mxu0 0.0
    %610 = vmatpush1.msra.mxu0 %v582
    %611 = vmatprep.subr.mxu0 0.0
    %612 = vmatpush1.msra.mxu0 %v583
    %613 = vmatprep.subr.mxu0 0.0
    %614 = vmatpush1.msra.mxu0 %v584
    %615 = vmatprep.subr.mxu0 0.0
    %616 = vmatpush1.msra.mxu0 %v585
    %617 = vmatprep.subr.mxu0 0.0
    %618 = vmatpush1.msra.mxu0 %v586
    %619 = vmatprep.subr.mxu0 0.0
    %620 = vmatpush1.msra.mxu0 0.0
    %621 = vmatprep.subr.mxu0 0.0
    %622 = vmatpush1.msra.mxu0 0.0
    %623 = vmatprep.subr.mxu0 0.0
    %624 = vmatpush1.msra.mxu0 0.0
    %625 = vmatprep.subr.mxu0 0.0
    %626 = vmatpush1.msra.mxu0 0.0
    %627 = vmatprep.subr.mxu0 0.0
    %628 = vmatpush1.msra.mxu0 0.0
    %629 = vmatprep.subr.mxu0 0.0
    %630 = vmatpush1.msra.mxu0 0.0
    %631 = vmatprep.subr.mxu0 0.0
    %632 = vmatpush1.msra.mxu0 0.0
    %633 = vmatprep.subr.mxu0 0.0
    %634 = vmatpush1.msra.mxu0 0.0
    %635 = vmatprep.subr.mxu0 0.0
    %636 = vmatpush1.msra.mxu0 0.0
    %637 = vmatprep.subr.mxu0 0.0
    %638 = vmatpush1.msra.mxu0 0.0
    %639 = vmatprep.subr.mxu0 0.0
    %640 = vmatpush1.msra.mxu0 0.0
    %641 = vmatprep.subr.mxu0 0.0
    %642 = vmatpush1.msra.mxu0 0.0
    %643 = vmatprep.subr.mxu0 0.0
    %644 = vmatpush1.msra.mxu0 0.0
    %645 = vmatprep.subr.mxu0 0.0
    %646 = vmatpush1.msra.mxu0 0.0
    %647 = vmatprep.subr.mxu0 0.0
    %648 = vmatpush1.msra.mxu0 0.0
    %649 = vmatprep.subr.mxu0 0.0
    %650 = vmatpush1.msra.mxu0 0.0
    %651 = vmatprep.mubr.f32.mxu0 0.0
    %652 = vmatmul.mubr.f32.gmra.mrb[0].mxu0 %v568
    %v653 = vpop.f32.mrb[0].mxu0
    %v654 = vadd.f32 %v16, %v653
    %v655 = vpop.f32.mrb[0].mxu0
    %656 = vdwg.mxu0
    %v657 = vtanh.pop %v654
    %v658 = vld [vmem:[%s1 + $0x88] sm:$0xff]
    %v659 = vld [vmem:[%s1 + $0x90] sm:$0xff]
    %v660 = vld [vmem:[%s1 + $0x98] sm:$0xff]
    %v661 = vld [vmem:[%s1 + $0xa0] sm:$0xff]
    %v662 = vld [vmem:[%s1 + $0xa8] sm:$0xff]
    %v663 = vld [vmem:[%s1 + $0xb0] sm:$0xff]
    %v664 = vld [vmem:[%s1 + $0xb8] sm:$0xff]
    %v665 = vld [vmem:[%s1 + $0xc0] sm:$0xff]
    %v666 = vld [vmem:[%s1 + $0xc8] sm:$0xff]
    %v667 = vld [vmem:[%s1 + $0xd0] sm:$0xff]
    %v668 = vld [vmem:[%s1 + $0xd8] sm:$0xff]
    %v669 = vld [vmem:[%s1 + $0xe0] sm:$0xff]
    %v670 = vld [vmem:[%s1 + $0xe8] sm:$0xff]
    %v671 = vld [vmem:[%s1 + $0xf0] sm:$0xff]
    %v672 = vld [vmem:[%s1 + $0xf8] sm:$0xff]
    %v673 = vld [vmem:[%s1 + $0x100] sm:$0xff]
    %674 = vmatprep.subr.mxu0 0.0
    %675 = vmatpush1.msra.mxu0 %v658
    %676 = vmatprep.subr.mxu0 0.0
    %677 = vmatpush1.msra.mxu0 %v659
    %678 = vmatprep.subr.mxu0 0.0
    %679 = vmatpush1.msra.mxu0 %v660
    %680 = vmatprep.subr.mxu0 0.0
    %681 = vmatpush1.msra.mxu0 %v661
    %682 = vmatprep.subr.mxu0 0.0
    %683 = vmatpush1.msra.mxu0 %v662
    %684 = vmatprep.subr.mxu0 0.0
    %685 = vmatpush1.msra.mxu0 %v663
    %686 = vmatprep.subr.mxu0 0.0
    %687 = vmatpush1.msra.mxu0 %v664
    %688 = vmatprep.subr.mxu0 0.0
    %689 = vmatpush1.msra.mxu0 %v665
    %690 = vmatprep.subr.mxu0 0.0
    %691 = vmatpush1.msra.mxu0 %v666
    %692 = vmatprep.subr.mxu0 0.0
    %693 = vmatpush1.msra.mxu0 %v667
    %694 = vmatprep.subr.mxu0 0.0
    %695 = vmatpush1.msra.mxu0 %v668
    %696 = vmatprep.subr.mxu0 0.0
    %697 = vmatpush1.msra.mxu0 %v669
    %698 = vmatprep.subr.mxu0 0.0
    %699 = vmatpush1.msra.mxu0 %v670
    %700 = vmatprep.subr.mxu0 0.0
    %701 = vmatpush1.msra.mxu0 %v671
    %702 = vmatprep.subr.mxu0 0.0
    %703 = vmatpush1.msra.mxu0 %v672
    %704 = vmatprep.subr.mxu0 0.0
    %705 = vmatpush1.msra.mxu0 %v673
    %706 = vmatprep.subr.mxu0 0.0
    %707 = vmatpush1.msra.mxu0 0.0
    %708 = vmatprep.subr.mxu0 0.0
    %709 = vmatpush1.msra.mxu0 0.0
    %710 = vmatprep.subr.mxu0 0.0
    %711 = vmatpush1.msra.mxu0 0.0
    %712 = vmatprep.subr.mxu0 0.0
    %713 = vmatpush1.msra.mxu0 0.0
    %714 = vmatprep.subr.mxu0 0.0
    %715 = vmatpush1.msra.mxu0 0.0
    %716 = vmatprep.subr.mxu0 0.0
    %717 = vmatpush1.msra.mxu0 0.0
    %718 = vmatprep.subr.mxu0 0.0
    %719 = vmatpush1.msra.mxu0 0.0
    %720 = vmatprep.subr.mxu0 0.0
    %721 = vmatpush1.msra.mxu0 0.0
    %722 = vmatprep.subr.mxu0 0.0
    %723 = vmatpush1.msra.mxu0 0.0
    %724 = vmatprep.subr.mxu0 0.0
    %725 = vmatpush1.msra.mxu0 0.0
    %726 = vmatprep.subr.mxu0 0.0
    %727 = vmatpush1.msra.mxu0 0.0
    %728 = vmatprep.subr.mxu0 0.0
    %729 = vmatpush1.msra.mxu0 0.0
    %730 = vmatprep.subr.mxu0 0.0
    %731 = vmatpush1.msra.mxu0 0.0
    %732 = vmatprep.subr.mxu0 0.0
    %733 = vmatpush1.msra.mxu0 0.0
    %734 = vmatprep.subr.mxu0 0.0
    %735 = vmatpush1.msra.mxu0 0.0
    %736 = vmatprep.subr.mxu0 0.0
    %737 = vmatpush1.msra.mxu0 0.0
    %738 = vmatprep.mubr.f32.mxu0 0.0
    %739 = vmatmul.mubr.f32.gmra.mrb[0].mxu0 %v657
    %v740 = vpop.f32.mrb[0].mxu0
    %v741 = vadd.f32 %v21, %v740
    %v742 = vpop.f32.mrb[0].mxu0
    %743 = vdwg.mxu0
    %v744 = vmax.f32 %v741, 0.0
    %v745 = vand.u32 2147483647, %v741
    %v746 = vsub.f32 0.0, %v745
    %v747 = vmul.f32 %v746, 1.442695
    %v748 = vpow.pop %v747
    %v749 = vadd.f32 %v748, 1.0
    %v750 = vlog2.pop %v749
    %v751 = vmul.f32 %v750, 0.6931472
    %v752 = vadd.f32 %v744, %v751
    %v753 = vld [vmem:[%s1 + $0x110] sm:$0xff]
    %v754 = vld [vmem:[%s1 + $0x118] sm:$0xff]
    %v755 = vld [vmem:[%s1 + $0x120] sm:$0xff]
    %v756 = vld [vmem:[%s1 + $0x128] sm:$0xff]
    %v757 = vld [vmem:[%s1 + $0x130] sm:$0xff]
    %v758 = vld [vmem:[%s1 + $0x138] sm:$0xff]
    %v759 = vld [vmem:[%s1 + $0x140] sm:$0xff]
    %v760 = vld [vmem:[%s1 + $0x148] sm:$0xff]
    %v761 = vld [vmem:[%s1 + $0x150] sm:$0xff]
    %v762 = vld [vmem:[%s1 + $0x158] sm:$0xff]
    %v763 = vld [vmem:[%s1 + $0x160] sm:$0xff]
    %v764 = vld [vmem:[%s1 + $0x168] sm:$0xff]
    %v765 = vld [vmem:[%s1 + $0x170] sm:$0xff]
    %v766 = vld [vmem:[%s1 + $0x178] sm:$0xff]
    %v767 = vld [vmem:[%s1 + $0x180] sm:$0xff]
    %v768 = vld [vmem:[%s1 + $0x188] sm:$0xff]
    %769 = vmatprep.subr.mxu0 0.0
    %770 = vmatpush1.msra.mxu0 %v753
    %771 = vmatprep.subr.mxu0 0.0
    %772 = vmatpush1.msra.mxu0 %v754
    %773 = vmatprep.subr.mxu0 0.0
    %774 = vmatpush1.msra.mxu0 %v755
    %775 = vmatprep.subr.mxu0 0.0
    %776 = vmatpush1.msra.mxu0 %v756
    %777 = vmatprep.subr.mxu0 0.0
    %778 = vmatpush1.msra.mxu0 %v757
    %779 = vmatprep.subr.mxu0 0.0
    %780 = vmatpush1.msra.mxu0 %v758
    %781 = vmatprep.subr.mxu0 0.0
    %782 = vmatpush1.msra.mxu0 %v759
    %783 = vmatprep.subr.mxu0 0.0
    %784 = vmatpush1.msra.mxu0 %v760
    %785 = vmatprep.subr.mxu0 0.0
    %786 = vmatpush1.msra.mxu0 %v761
    %787 = vmatprep.subr.mxu0 0.0
    %788 = vmatpush1.msra.mxu0 %v762
    %789 = vmatprep.subr.mxu0 0.0
    %790 = vmatpush1.msra.mxu0 %v763
    %791 = vmatprep.subr.mxu0 0.0
    %792 = vmatpush1.msra.mxu0 %v764
    %793 = vmatprep.subr.mxu0 0.0
    %794 = vmatpush1.msra.mxu0 %v765
    %795 = vmatprep.subr.mxu0 0.0
    %796 = vmatpush1.msra.mxu0 %v766
    %797 = vmatprep.subr.mxu0 0.0
    %798 = vmatpush1.msra.mxu0 %v767
    %799 = vmatprep.subr.mxu0 0.0
    %800 = vmatpush1.msra.mxu0 %v768
    %801 = vmatprep.subr.mxu0 0.0
    %802 = vmatpush1.msra.mxu0 0.0
    %803 = vmatprep.subr.mxu0 0.0
    %804 = vmatpush1.msra.mxu0 0.0
    %805 = vmatprep.subr.mxu0 0.0
    %806 = vmatpush1.msra.mxu0 0.0
    %807 = vmatprep.subr.mxu0 0.0
    %808 = vmatpush1.msra.mxu0 0.0
    %809 = vmatprep.subr.mxu0 0.0
    %810 = vmatpush1.msra.mxu0 0.0
    %811 = vmatprep.subr.mxu0 0.0
    %812 = vmatpush1.msra.mxu0 0.0
    %813 = vmatprep.subr.mxu0 0.0
    %814 = vmatpush1.msra.mxu0 0.0
    %815 = vmatprep.subr.mxu0 0.0
    %816 = vmatpush1.msra.mxu0 0.0
    %817 = vmatprep.subr.mxu0 0.0
    %818 = vmatpush1.msra.mxu0 0.0
    %819 = vmatprep.subr.mxu0 0.0
    %820 = vmatpush1.msra.mxu0 0.0
    %821 = vmatprep.subr.mxu0 0.0
    %822 = vmatpush1.msra.mxu0 0.0
    %823 = vmatprep.subr.mxu0 0.0
    %824 = vmatpush1.msra.mxu0 0.0
    %825 = vmatprep.subr.mxu0 0.0
    %826 = vmatpush1.msra.mxu0 0.0
    %827 = vmatprep.subr.mxu0 0.0
    %828 = vmatpush1.msra.mxu0 0.0
    %829 = vmatprep.subr.mxu0 0.0
    %830 = vmatpush1.msra.mxu0 0.0
    %831 = vmatprep.subr.mxu0 0.0
    %832 = vmatpush1.msra.mxu0 0.0
    %833 = vmatprep.mubr.f32.mxu0 0.0
    %834 = vmatmul.mubr.f32.gmra.mrb[0].mxu0 %v752
    %v835 = vpop.f32.mrb[0].mxu0
    %v836 = vadd.f32 %v26, %v835
    %v837 = vpop.f32.mrb[0].mxu0
    %838 = vdwg.mxu0
    %v839 = vadd.f32 %v568, %v836
    %s840 = scalar_lea.vmem [#allocation2], 24
    %841 = vst [vmem:[%s840] sm:$0xff] %v839
    %v842 = vld [vmem:[%s1] sm:$0xff]
    %v843 = vld [vmem:[%s1 + $0x8] sm:$0xff]
    %v844 = vld [vmem:[%s1 + $0x10] sm:$0xff]
    %v845 = vld [vmem:[%s1 + $0x18] sm:$0xff]
    %v846 = vld [vmem:[%s1 + $0x20] sm:$0xff]
    %v847 = vld [vmem:[%s1 + $0x28] sm:$0xff]
    %v848 = vld [vmem:[%s1 + $0x30] sm:$0xff]
    %v849 = vld [vmem:[%s1 + $0x38] sm:$0xff]
    %v850 = vld [vmem:[%s1 + $0x40] sm:$0xff]
    %v851 = vld [vmem:[%s1 + $0x48] sm:$0xff]
    %v852 = vld [vmem:[%s1 + $0x50] sm:$0xff]
    %v853 = vld [vmem:[%s1 + $0x58] sm:$0xff]
    %v854 = vld [vmem:[%s1 + $0x60] sm:$0xff]
    %v855 = vld [vmem:[%s1 + $0x68] sm:$0xff]
    %v856 = vld [vmem:[%s1 + $0x70] sm:$0xff]
    %v857 = vld [vmem:[%s1 + $0x78] sm:$0xff]
    %858 = vmatprep.subr.mxu0 0.0
    %859 = vmatpush1.msra.mxu0 %v842
    %860 = vmatprep.subr.mxu0 0.0
    %861 = vmatpush1.msra.mxu0 %v843
    %862 = vmatprep.subr.mxu0 0.0
    %863 = vmatpush1.msra.mxu0 %v844
    %864 = vmatprep.subr.mxu0 0.0
    %865 = vmatpush1.msra.mxu0 %v845
    %866 = vmatprep.subr.mxu0 0.0
    %867 = vmatpush1.msra.mxu0 %v846
    %868 = vmatprep.subr.mxu0 0.0
    %869 = vmatpush1.msra.mxu0 %v847
    %870 = vmatprep.subr.mxu0 0.0
    %871 = vmatpush1.msra.mxu0 %v848
    %872 = vmatprep.subr.mxu0 0.0
    %873 = vmatpush1.msra.mxu0 %v849
    %874 = vmatprep.subr.mxu0 0.0
    %875 = vmatpush1.msra.mxu0 %v850
    %876 = vmatprep.subr.mxu0 0.0
    %877 = vmatpush1.msra.mxu0 %v851
    %878 = vmatprep.subr.mxu0 0.0
    %879 = vmatpush1.msra.mxu0 %v852
    %880 = vmatprep.subr.mxu0 0.0
    %881 = vmatpush1.msra.mxu0 %v853
    %882 = vmatprep.subr.mxu0 0.0
    %883 = vmatpush1.msra.mxu0 %v854
    %884 = vmatprep.subr.mxu0 0.0
    %885 = vmatpush1.msra.mxu0 %v855
    %886 = vmatprep.subr.mxu0 0.0
    %887 = vmatpush1.msra.mxu0 %v856
    %888 = vmatprep.subr.mxu0 0.0
    %889 = vmatpush1.msra.mxu0 %v857
    %890 = vmatprep.subr.mxu0 0.0
    %891 = vmatpush1.msra.mxu0 0.0
    %892 = vmatprep.subr.mxu0 0.0
    %893 = vmatpush1.msra.mxu0 0.0
    %894 = vmatprep.subr.mxu0 0.0
    %895 = vmatpush1.msra.mxu0 0.0
    %896 = vmatprep.subr.mxu0 0.0
    %897 = vmatpush1.msra.mxu0 0.0
    %898 = vmatprep.subr.mxu0 0.0
    %899 = vmatpush1.msra.mxu0 0.0
    %900 = vmatprep.subr.mxu0 0.0
    %901 = vmatpush1.msra.mxu0 0.0
    %902 = vmatprep.subr.mxu0 0.0
    %903 = vmatpush1.msra.mxu0 0.0
    %904 = vmatprep.subr.mxu0 0.0
    %905 = vmatpush1.msra.mxu0 0.0
    %906 = vmatprep.subr.mxu0 0.0
    %907 = vmatpush1.msra.mxu0 0.0
    %908 = vmatprep.subr.mxu0 0.0
    %909 = vmatpush1.msra.mxu0 0.0
    %910 = vmatprep.subr.mxu0 0.0
    %911 = vmatpush1.msra.mxu0 0.0
    %912 = vmatprep.subr.mxu0 0.0
    %913 = vmatpush1.msra.mxu0 0.0
    %914 = vmatprep.subr.mxu0 0.0
    %915 = vmatpush1.msra.mxu0 0.0
    %916 = vmatprep.subr.mxu0 0.0
    %917 = vmatpush1.msra.mxu0 0.0
    %918 = vmatprep.subr.mxu0 0.0
    %919 = vmatpush1.msra.mxu0 0.0
    %920 = vmatprep.subr.mxu0 0.0
    %921 = vmatpush1.msra.mxu0 0.0
    %922 = vmatprep.mubr.f32.mxu0 0.0
    %923 = vmatmul.mubr.f32.gmra.mrb[0].mxu0 %v839
    %v924 = vpop.f32.mrb[0].mxu0
    %v925 = vadd.f32 %v16, %v924
    %v926 = vpop.f32.mrb[0].mxu0
    %927 = vdwg.mxu0
    %v928 = vtanh.pop %v925
    %v929 = vld [vmem:[%s1 + $0x88] sm:$0xff]
    %v930 = vld [vmem:[%s1 + $0x90] sm:$0xff]
    %v931 = vld [vmem:[%s1 + $0x98] sm:$0xff]
    %v932 = vld [vmem:[%s1 + $0xa0] sm:$0xff]
    %v933 = vld [vmem:[%s1 + $0xa8] sm:$0xff]
    %v934 = vld [vmem:[%s1 + $0xb0] sm:$0xff]
    %v935 = vld [vmem:[%s1 + $0xb8] sm:$0xff]
    %v936 = vld [vmem:[%s1 + $0xc0] sm:$0xff]
    %v937 = vld [vmem:[%s1 + $0xc8] sm:$0xff]
    %v938 = vld [vmem:[%s1 + $0xd0] sm:$0xff]
    %v939 = vld [vmem:[%s1 + $0xd8] sm:$0xff]
    %v940 = vld [vmem:[%s1 + $0xe0] sm:$0xff]
    %v941 = vld [vmem:[%s1 + $0xe8] sm:$0xff]
    %v942 = vld [vmem:[%s1 + $0xf0] sm:$0xff]
    %v943 = vld [vmem:[%s1 + $0xf8] sm:$0xff]
    %v944 = vld [vmem:[%s1 + $0x100] sm:$0xff]
    %945 = vmatprep.subr.mxu0 0.0
    %946 = vmatpush1.msra.mxu0 %v929
    %947 = vmatprep.subr.mxu0 0.0
    %948 = vmatpush1.msra.mxu0 %v930
    %949 = vmatprep.subr.mxu0 0.0
    %950 = vmatpush1.msra.mxu0 %v931
    %951 = vmatprep.subr.mxu0 0.0
    %952 = vmatpush1.msra.mxu0 %v932
    %953 = vmatprep.subr.mxu0 0.0
    %954 = vmatpush1.msra.mxu0 %v933
    %955 = vmatprep.subr.mxu0 0.0
    %956 = vmatpush1.msra.mxu0 %v934
    %957 = vmatprep.subr.mxu0 0.0
    %958 = vmatpush1.msra.mxu0 %v935
    %959 = vmatprep.subr.mxu0 0.0
    %960 = vmatpush1.msra.mxu0 %v936
    %961 = vmatprep.subr.mxu0 0.0
    %962 = vmatpush1.msra.mxu0 %v937
    %963 = vmatprep.subr.mxu0 0.0
    %964 = vmatpush1.msra.mxu0 %v938
    %965 = vmatprep.subr.mxu0 0.0
    %966 = vmatpush1.msra.mxu0 %v939
    %967 = vmatprep.subr.mxu0 0.0
    %968 = vmatpush1.msra.mxu0 %v940
    %969 = vmatprep.subr.mxu0 0.0
    %970 = vmatpush1.msra.mxu0 %v941
    %971 = vmatprep.subr.mxu0 0.0
    %972 = vmatpush1.msra.mxu0 %v942
    %973 = vmatprep.subr.mxu0 0.0
    %974 = vmatpush1.msra.mxu0 %v943
    %975 = vmatprep.subr.mxu0 0.0
    %976 = vmatpush1.msra.mxu0 %v944
    %977 = vmatprep.subr.mxu0 0.0
    %978 = vmatpush1.msra.mxu0 0.0
    %979 = vmatprep.subr.mxu0 0.0
    %980 = vmatpush1.msra.mxu0 0.0
    %981 = vmatprep.subr.mxu0 0.0
    %982 = vmatpush1.msra.mxu0 0.0
    %983 = vmatprep.subr.mxu0 0.0
    %984 = vmatpush1.msra.mxu0 0.0
    %985 = vmatprep.subr.mxu0 0.0
    %986 = vmatpush1.msra.mxu0 0.0
    %987 = vmatprep.subr.mxu0 0.0
    %988 = vmatpush1.msra.mxu0 0.0
    %989 = vmatprep.subr.mxu0 0.0
    %990 = vmatpush1.msra.mxu0 0.0
    %991 = vmatprep.subr.mxu0 0.0
    %992 = vmatpush1.msra.mxu0 0.0
    %993 = vmatprep.subr.mxu0 0.0
    %994 = vmatpush1.msra.mxu0 0.0
    %995 = vmatprep.subr.mxu0 0.0
    %996 = vmatpush1.msra.mxu0 0.0
    %997 = vmatprep.subr.mxu0 0.0
    %998 = vmatpush1.msra.mxu0 0.0
    %999 = vmatprep.subr.mxu0 0.0
    %1000 = vmatpush1.msra.mxu0 0.0
    %1001 = vmatprep.subr.mxu0 0.0
    %1002 = vmatpush1.msra.mxu0 0.0
    %1003 = vmatprep.subr.mxu0 0.0
    %1004 = vmatpush1.msra.mxu0 0.0
    %1005 = vmatprep.subr.mxu0 0.0
    %1006 = vmatpush1.msra.mxu0 0.0
    %1007 = vmatprep.subr.mxu0 0.0
    %1008 = vmatpush1.msra.mxu0 0.0
    %1009 = vmatprep.mubr.f32.mxu0 0.0
    %1010 = vmatmul.mubr.f32.gmra.mrb[0].mxu0 %v928
    %v1011 = vpop.f32.mrb[0].mxu0
    %v1012 = vadd.f32 %v21, %v1011
    %v1013 = vpop.f32.mrb[0].mxu0
    %1014 = vdwg.mxu0
    %v1015 = vmax.f32 %v1012, 0.0
    %v1016 = vand.u32 2147483647, %v1012
    %v1017 = vsub.f32 0.0, %v1016
    %v1018 = vmul.f32 %v1017, 1.442695
    %v1019 = vpow.pop %v1018
    %v1020 = vadd.f32 %v1019, 1.0
    %v1021 = vlog2.pop %v1020
    %v1022 = vmul.f32 %v1021, 0.6931472
    %v1023 = vadd.f32 %v1015, %v1022
    %v1024 = vld [vmem:[%s1 + $0x110] sm:$0xff]
    %v1025 = vld [vmem:[%s1 + $0x118] sm:$0xff]
    %v1026 = vld [vmem:[%s1 + $0x120] sm:$0xff]
    %v1027 = vld [vmem:[%s1 + $0x128] sm:$0xff]
    %v1028 = vld [vmem:[%s1 + $0x130] sm:$0xff]
    %v1029 = vld [vmem:[%s1 + $0x138] sm:$0xff]
    %v1030 = vld [vmem:[%s1 + $0x140] sm:$0xff]
    %v1031 = vld [vmem:[%s1 + $0x148] sm:$0xff]
    %v1032 = vld [vmem:[%s1 + $0x150] sm:$0xff]
    %v1033 = vld [vmem:[%s1 + $0x158] sm:$0xff]
    %v1034 = vld [vmem:[%s1 + $0x160] sm:$0xff]
    %v1035 = vld [vmem:[%s1 + $0x168] sm:$0xff]
    %v1036 = vld [vmem:[%s1 + $0x170] sm:$0xff]
    %v1037 = vld [vmem:[%s1 + $0x178] sm:$0xff]
    %v1038 = vld [vmem:[%s1 + $0x180] sm:$0xff]
    %v1039 = vld [vmem:[%s1 + $0x188] sm:$0xff]
    %1040 = vmatprep.subr.mxu0 0.0
    %1041 = vmatpush1.msra.mxu0 %v1024
    %1042 = vmatprep.subr.mxu0 0.0
    %1043 = vmatpush1.msra.mxu0 %v1025
    %1044 = vmatprep.subr.mxu0 0.0
    %1045 = vmatpush1.msra.mxu0 %v1026
    %1046 = vmatprep.subr.mxu0 0.0
    %1047 = vmatpush1.msra.mxu0 %v1027
    %1048 = vmatprep.subr.mxu0 0.0
    %1049 = vmatpush1.msra.mxu0 %v1028
    %1050 = vmatprep.subr.mxu0 0.0
    %1051 = vmatpush1.msra.mxu0 %v1029
    %1052 = vmatprep.subr.mxu0 0.0
    %1053 = vmatpush1.msra.mxu0 %v1030
    %1054 = vmatprep.subr.mxu0 0.0
    %1055 = vmatpush1.msra.mxu0 %v1031
    %1056 = vmatprep.subr.mxu0 0.0
    %1057 = vmatpush1.msra.mxu0 %v1032
    %1058 = vmatprep.subr.mxu0 0.0
    %1059 = vmatpush1.msra.mxu0 %v1033
    %1060 = vmatprep.subr.mxu0 0.0
    %1061 = vmatpush1.msra.mxu0 %v1034
    %1062 = vmatprep.subr.mxu0 0.0
    %1063 = vmatpush1.msra.mxu0 %v1035
    %1064 = vmatprep.subr.mxu0 0.0
    %1065 = vmatpush1.msra.mxu0 %v1036
    %1066 = vmatprep.subr.mxu0 0.0
    %1067 = vmatpush1.msra.mxu0 %v1037
    %1068 = vmatprep.subr.mxu0 0.0
    %1069 = vmatpush1.msra.mxu0 %v1038
    %1070 = vmatprep.subr.mxu0 0.0
    %1071 = vmatpush1.msra.mxu0 %v1039
    %1072 = vmatprep.subr.mxu0 0.0
    %1073 = vmatpush1.msra.mxu0 0.0
    %1074 = vmatprep.subr.mxu0 0.0
    %1075 = vmatpush1.msra.mxu0 0.0
    %1076 = vmatprep.subr.mxu0 0.0
    %1077 = vmatpush1.msra.mxu0 0.0
    %1078 = vmatprep.subr.mxu0 0.0
    %1079 = vmatpush1.msra.mxu0 0.0
    %1080 = vmatprep.subr.mxu0 0.0
    %1081 = vmatpush1.msra.mxu0 0.0
    %1082 = vmatprep.subr.mxu0 0.0
    %1083 = vmatpush1.msra.mxu0 0.0
    %1084 = vmatprep.subr.mxu0 0.0
    %1085 = vmatpush1.msra.mxu0 0.0
    %1086 = vmatprep.subr.mxu0 0.0
    %1087 = vmatpush1.msra.mxu0 0.0
    %1088 = vmatprep.subr.mxu0 0.0
    %1089 = vmatpush1.msra.mxu0 0.0
    %1090 = vmatprep.subr.mxu0 0.0
    %1091 = vmatpush1.msra.mxu0 0.0
    %1092 = vmatprep.subr.mxu0 0.0
    %1093 = vmatpush1.msra.mxu0 0.0
    %1094 = vmatprep.subr.mxu0 0.0
    %1095 = vmatpush1.msra.mxu0 0.0
    %1096 = vmatprep.subr.mxu0 0.0
    %1097 = vmatpush1.msra.mxu0 0.0
    %1098 = vmatprep.subr.mxu0 0.0
    %1099 = vmatpush1.msra.mxu0 0.0
    %1100 = vmatprep.subr.mxu0 0.0
    %1101 = vmatpush1.msra.mxu0 0.0
    %1102 = vmatprep.subr.mxu0 0.0
    %1103 = vmatpush1.msra.mxu0 0.0
    %1104 = vmatprep.mubr.f32.mxu0 0.0
    %1105 = vmatmul.mubr.f32.gmra.mrb[0].mxu0 %v1023
    %v1106 = vpop.f32.mrb[0].mxu0
    %v1107 = vadd.f32 %v26, %v1106
    %v1108 = vpop.f32.mrb[0].mxu0
    %1109 = vdwg.mxu0
    %v1110 = vadd.f32 %v839, %v1107
    %s1111 = scalar_lea.vmem [#allocation2], 32
    %1112 = vst [vmem:[%s1111] sm:$0xff] %v1110
    %v1113 = vld [vmem:[%s1] sm:$0xff]
    %v1114 = vld [vmem:[%s1 + $0x8] sm:$0xff]
    %v1115 = vld [vmem:[%s1 + $0x10] sm:$0xff]
    %v1116 = vld [vmem:[%s1 + $0x18] sm:$0xff]
    %v1117 = vld [vmem:[%s1 + $0x20] sm:$0xff]
    %v1118 = vld [vmem:[%s1 + $0x28] sm:$0xff]
    %v1119 = vld [vmem:[%s1 + $0x30] sm:$0xff]
    %v1120 = vld [vmem:[%s1 + $0x38] sm:$0xff]
    %v1121 = vld [vmem:[%s1 + $0x40] sm:$0xff]
    %v1122 = vld [vmem:[%s1 + $0x48] sm:$0xff]
    %v1123 = vld [vmem:[%s1 + $0x50] sm:$0xff]
    %v1124 = vld [vmem:[%s1 + $0x58] sm:$0xff]
    %v1125 = vld [vmem:[%s1 + $0x60] sm:$0xff]
    %v1126 = vld [vmem:[%s1 + $0x68] sm:$0xff]
    %v1127 = vld [vmem:[%s1 + $0x70] sm:$0xff]
    %v1128 = vld [vmem:[%s1 + $0x78] sm:$0xff]
    %1129 = vmatprep.subr.mxu0 0.0
    %1130 = vmatpush1.msra.mxu0 %v1113
    %1131 = vmatprep.subr.mxu0 0.0
    %1132 = vmatpush1.msra.mxu0 %v1114
    %1133 = vmatprep.subr.mxu0 0.0
    %1134 = vmatpush1.msra.mxu0 %v1115
    %1135 = vmatprep.subr.mxu0 0.0
    %1136 = vmatpush1.msra.mxu0 %v1116
    %1137 = vmatprep.subr.mxu0 0.0
    %1138 = vmatpush1.msra.mxu0 %v1117
    %1139 = vmatprep.subr.mxu0 0.0
    %1140 = vmatpush1.msra.mxu0 %v1118
    %1141 = vmatprep.subr.mxu0 0.0
    %1142 = vmatpush1.msra.mxu0 %v1119
    %1143 = vmatprep.subr.mxu0 0.0
    %1144 = vmatpush1.msra.mxu0 %v1120
    %1145 = vmatprep.subr.mxu0 0.0
    %1146 = vmatpush1.msra.mxu0 %v1121
    %1147 = vmatprep.subr.mxu0 0.0
    %1148 = vmatpush1.msra.mxu0 %v1122
    %1149 = vmatprep.subr.mxu0 0.0
    %1150 = vmatpush1.msra.mxu0 %v1123
    %1151 = vmatprep.subr.mxu0 0.0
    %1152 = vmatpush1.msra.mxu0 %v1124
    %1153 = vmatprep.subr.mxu0 0.0
    %1154 = vmatpush1.msra.mxu0 %v1125
    %1155 = vmatprep.subr.mxu0 0.0
    %1156 = vmatpush1.msra.mxu0 %v1126
    %1157 = vmatprep.subr.mxu0 0.0
    %1158 = vmatpush1.msra.mxu0 %v1127
    %1159 = vmatprep.subr.mxu0 0.0
    %1160 = vmatpush1.msra.mxu0 %v1128
    %1161 = vmatprep.subr.mxu0 0.0
    %1162 = vmatpush1.msra.mxu0 0.0
    %1163 = vmatprep.subr.mxu0 0.0
    %1164 = vmatpush1.msra.mxu0 0.0
    %1165 = vmatprep.subr.mxu0 0.0
    %1166 = vmatpush1.msra.mxu0 0.0
    %1167 = vmatprep.subr.mxu0 0.0
    %1168 = vmatpush1.msra.mxu0 0.0
    %1169 = vmatprep.subr.mxu0 0.0
    %1170 = vmatpush1.msra.mxu0 0.0
    %1171 = vmatprep.subr.mxu0 0.0
    %1172 = vmatpush1.msra.mxu0 0.0
    %1173 = vmatprep.subr.mxu0 0.0
    %1174 = vmatpush1.msra.mxu0 0.0
    %1175 = vmatprep.subr.mxu0 0.0
    %1176 = vmatpush1.msra.mxu0 0.0
    %1177 = vmatprep.subr.mxu0 0.0
    %1178 = vmatpush1.msra.mxu0 0.0
    %1179 = vmatprep.subr.mxu0 0.0
    %1180 = vmatpush1.msra.mxu0 0.0
    %1181 = vmatprep.subr.mxu0 0.0
    %1182 = vmatpush1.msra.mxu0 0.0
    %1183 = vmatprep.subr.mxu0 0.0
    %1184 = vmatpush1.msra.mxu0 0.0
    %1185 = vmatprep.subr.mxu0 0.0
    %1186 = vmatpush1.msra.mxu0 0.0
    %1187 = vmatprep.subr.mxu0 0.0
    %1188 = vmatpush1.msra.mxu0 0.0
    %1189 = vmatprep.subr.mxu0 0.0
    %1190 = vmatpush1.msra.mxu0 0.0
    %1191 = vmatprep.subr.mxu0 0.0
    %1192 = vmatpush1.msra.mxu0 0.0
    %1193 = vmatprep.mubr.f32.mxu0 0.0
    %1194 = vmatmul.mubr.f32.gmra.mrb[0].mxu0 %v1110
    %v1195 = vpop.f32.mrb[0].mxu0
    %v1196 = vadd.f32 %v16, %v1195
    %v1197 = vpop.f32.mrb[0].mxu0
    %1198 = vdwg.mxu0
    %v1199 = vtanh.pop %v1196
    %v1200 = vld [vmem:[%s1 + $0x88] sm:$0xff]
    %v1201 = vld [vmem:[%s1 + $0x90] sm:$0xff]
    %v1202 = vld [vmem:[%s1 + $0x98] sm:$0xff]
    %v1203 = vld [vmem:[%s1 + $0xa0] sm:$0xff]
    %v1204 = vld [vmem:[%s1 + $0xa8] sm:$0xff]
    %v1205 = vld [vmem:[%s1 + $0xb0] sm:$0xff]
    %v1206 = vld [vmem:[%s1 + $0xb8] sm:$0xff]
    %v1207 = vld [vmem:[%s1 + $0xc0] sm:$0xff]
    %v1208 = vld [vmem:[%s1 + $0xc8] sm:$0xff]
    %v1209 = vld [vmem:[%s1 + $0xd0] sm:$0xff]
    %v1210 = vld [vmem:[%s1 + $0xd8] sm:$0xff]
    %v1211 = vld [vmem:[%s1 + $0xe0] sm:$0xff]
    %v1212 = vld [vmem:[%s1 + $0xe8] sm:$0xff]
    %v1213 = vld [vmem:[%s1 + $0xf0] sm:$0xff]
    %v1214 = vld [vmem:[%s1 + $0xf8] sm:$0xff]
    %v1215 = vld [vmem:[%s1 + $0x100] sm:$0xff]
    %1216 = vmatprep.subr.mxu0 0.0
    %1217 = vmatpush1.msra.mxu0 %v1200
    %1218 = vmatprep.subr.mxu0 0.0
    %1219 = vmatpush1.msra.mxu0 %v1201
    %1220 = vmatprep.subr.mxu0 0.0
    %1221 = vmatpush1.msra.mxu0 %v1202
    %1222 = vmatprep.subr.mxu0 0.0
    %1223 = vmatpush1.msra.mxu0 %v1203
    %1224 = vmatprep.subr.mxu0 0.0
    %1225 = vmatpush1.msra.mxu0 %v1204
    %1226 = vmatprep.subr.mxu0 0.0
    %1227 = vmatpush1.msra.mxu0 %v1205
    %1228 = vmatprep.subr.mxu0 0.0
    %1229 = vmatpush1.msra.mxu0 %v1206
    %1230 = vmatprep.subr.mxu0 0.0
    %1231 = vmatpush1.msra.mxu0 %v1207
    %1232 = vmatprep.subr.mxu0 0.0
    %1233 = vmatpush1.msra.mxu0 %v1208
    %1234 = vmatprep.subr.mxu0 0.0
    %1235 = vmatpush1.msra.mxu0 %v1209
    %1236 = vmatprep.subr.mxu0 0.0
    %1237 = vmatpush1.msra.mxu0 %v1210
    %1238 = vmatprep.subr.mxu0 0.0
    %1239 = vmatpush1.msra.mxu0 %v1211
    %1240 = vmatprep.subr.mxu0 0.0
    %1241 = vmatpush1.msra.mxu0 %v1212
    %1242 = vmatprep.subr.mxu0 0.0
    %1243 = vmatpush1.msra.mxu0 %v1213
    %1244 = vmatprep.subr.mxu0 0.0
    %1245 = vmatpush1.msra.mxu0 %v1214
    %1246 = vmatprep.subr.mxu0 0.0
    %1247 = vmatpush1.msra.mxu0 %v1215
    %1248 = vmatprep.subr.mxu0 0.0
    %1249 = vmatpush1.msra.mxu0 0.0
    %1250 = vmatprep.subr.mxu0 0.0
    %1251 = vmatpush1.msra.mxu0 0.0
    %1252 = vmatprep.subr.mxu0 0.0
    %1253 = vmatpush1.msra.mxu0 0.0
    %1254 = vmatprep.subr.mxu0 0.0
    %1255 = vmatpush1.msra.mxu0 0.0
    %1256 = vmatprep.subr.mxu0 0.0
    %1257 = vmatpush1.msra.mxu0 0.0
    %1258 = vmatprep.subr.mxu0 0.0
    %1259 = vmatpush1.msra.mxu0 0.0
    %1260 = vmatprep.subr.mxu0 0.0
    %1261 = vmatpush1.msra.mxu0 0.0
    %1262 = vmatprep.subr.mxu0 0.0
    %1263 = vmatpush1.msra.mxu0 0.0
    %1264 = vmatprep.subr.mxu0 0.0
    %1265 = vmatpush1.msra.mxu0 0.0
    %1266 = vmatprep.subr.mxu0 0.0
    %1267 = vmatpush1.msra.mxu0 0.0
    %1268 = vmatprep.subr.mxu0 0.0
    %1269 = vmatpush1.msra.mxu0 0.0
    %1270 = vmatprep.subr.mxu0 0.0
    %1271 = vmatpush1.msra.mxu0 0.0
    %1272 = vmatprep.subr.mxu0 0.0
    %1273 = vmatpush1.msra.mxu0 0.0
    %1274 = vmatprep.subr.mxu0 0.0
    %1275 = vmatpush1.msra.mxu0 0.0
    %1276 = vmatprep.subr.mxu0 0.0
    %1277 = vmatpush1.msra.mxu0 0.0
    %1278 = vmatprep.subr.mxu0 0.0
    %1279 = vmatpush1.msra.mxu0 0.0
    %1280 = vmatprep.mubr.f32.mxu0 0.0
    %1281 = vmatmul.mubr.f32.gmra.mrb[0].mxu0 %v1199
    %v1282 = vpop.f32.mrb[0].mxu0
    %v1283 = vadd.f32 %v21, %v1282
    %v1284 = vpop.f32.mrb[0].mxu0
    %1285 = vdwg.mxu0
    %v1286 = vmax.f32 %v1283, 0.0
    %v1287 = vand.u32 2147483647, %v1283
    %v1288 = vsub.f32 0.0, %v1287
    %v1289 = vmul.f32 %v1288, 1.442695
    %v1290 = vpow.pop %v1289
    %v1291 = vadd.f32 %v1290, 1.0
    %v1292 = vlog2.pop %v1291
    %v1293 = vmul.f32 %v1292, 0.6931472
    %v1294 = vadd.f32 %v1286, %v1293
    %v1295 = vld [vmem:[%s1 + $0x110] sm:$0xff]
    %v1296 = vld [vmem:[%s1 + $0x118] sm:$0xff]
    %v1297 = vld [vmem:[%s1 + $0x120] sm:$0xff]
    %v1298 = vld [vmem:[%s1 + $0x128] sm:$0xff]
    %v1299 = vld [vmem:[%s1 + $0x130] sm:$0xff]
    %v1300 = vld [vmem:[%s1 + $0x138] sm:$0xff]
    %v1301 = vld [vmem:[%s1 + $0x140] sm:$0xff]
    %v1302 = vld [vmem:[%s1 + $0x148] sm:$0xff]
    %v1303 = vld [vmem:[%s1 + $0x150] sm:$0xff]
    %v1304 = vld [vmem:[%s1 + $0x158] sm:$0xff]
    %v1305 = vld [vmem:[%s1 + $0x160] sm:$0xff]
    %v1306 = vld [vmem:[%s1 + $0x168] sm:$0xff]
    %v1307 = vld [vmem:[%s1 + $0x170] sm:$0xff]
    %v1308 = vld [vmem:[%s1 + $0x178] sm:$0xff]
    %v1309 = vld [vmem:[%s1 + $0x180] sm:$0xff]
    %v1310 = vld [vmem:[%s1 + $0x188] sm:$0xff]
    %1311 = vmatprep.subr.mxu0 0.0
    %1312 = vmatpush1.msra.mxu0 %v1295
    %1313 = vmatprep.subr.mxu0 0.0
    %1314 = vmatpush1.msra.mxu0 %v1296
    %1315 = vmatprep.subr.mxu0 0.0
    %1316 = vmatpush1.msra.mxu0 %v1297
    %1317 = vmatprep.subr.mxu0 0.0
    %1318 = vmatpush1.msra.mxu0 %v1298
    %1319 = vmatprep.subr.mxu0 0.0
    %1320 = vmatpush1.msra.mxu0 %v1299
    %1321 = vmatprep.subr.mxu0 0.0
    %1322 = vmatpush1.msra.mxu0 %v1300
    %1323 = vmatprep.subr.mxu0 0.0
    %1324 = vmatpush1.msra.mxu0 %v1301
    %1325 = vmatprep.subr.mxu0 0.0
    %1326 = vmatpush1.msra.mxu0 %v1302
    %1327 = vmatprep.subr.mxu0 0.0
    %1328 = vmatpush1.msra.mxu0 %v1303
    %1329 = vmatprep.subr.mxu0 0.0
    %1330 = vmatpush1.msra.mxu0 %v1304
    %1331 = vmatprep.subr.mxu0 0.0
    %1332 = vmatpush1.msra.mxu0 %v1305
    %1333 = vmatprep.subr.mxu0 0.0
    %1334 = vmatpush1.msra.mxu0 %v1306
    %1335 = vmatprep.subr.mxu0 0.0
    %1336 = vmatpush1.msra.mxu0 %v1307
    %1337 = vmatprep.subr.mxu0 0.0
    %1338 = vmatpush1.msra.mxu0 %v1308
    %1339 = vmatprep.subr.mxu0 0.0
    %1340 = vmatpush1.msra.mxu0 %v1309
    %1341 = vmatprep.subr.mxu0 0.0
    %1342 = vmatpush1.msra.mxu0 %v1310
    %1343 = vmatprep.subr.mxu0 0.0
    %1344 = vmatpush1.msra.mxu0 0.0
    %1345 = vmatprep.subr.mxu0 0.0
    %1346 = vmatpush1.msra.mxu0 0.0
    %1347 = vmatprep.subr.mxu0 0.0
    %1348 = vmatpush1.msra.mxu0 0.0
    %1349 = vmatprep.subr.mxu0 0.0
    %1350 = vmatpush1.msra.mxu0 0.0
    %1351 = vmatprep.subr.mxu0 0.0
    %1352 = vmatpush1.msra.mxu0 0.0
    %1353 = vmatprep.subr.mxu0 0.0
    %1354 = vmatpush1.msra.mxu0 0.0
    %1355 = vmatprep.subr.mxu0 0.0
    %1356 = vmatpush1.msra.mxu0 0.0
    %1357 = vmatprep.subr.mxu0 0.0
    %1358 = vmatpush1.msra.mxu0 0.0
    %1359 = vmatprep.subr.mxu0 0.0
    %1360 = vmatpush1.msra.mxu0 0.0
    %1361 = vmatprep.subr.mxu0 0.0
    %1362 = vmatpush1.msra.mxu0 0.0
    %1363 = vmatprep.subr.mxu0 0.0
    %1364 = vmatpush1.msra.mxu0 0.0
    %1365 = vmatprep.subr.mxu0 0.0
    %1366 = vmatpush1.msra.mxu0 0.0
    %1367 = vmatprep.subr.mxu0 0.0
    %1368 = vmatpush1.msra.mxu0 0.0
    %1369 = vmatprep.subr.mxu0 0.0
    %1370 = vmatpush1.msra.mxu0 0.0
    %1371 = vmatprep.subr.mxu0 0.0
    %1372 = vmatpush1.msra.mxu0 0.0
    %1373 = vmatprep.subr.mxu0 0.0
    %1374 = vmatpush1.msra.mxu0 0.0
    %1375 = vmatprep.mubr.f32.mxu0 0.0
    %1376 = vmatmul.mubr.f32.gmra.mrb[0].mxu0 %v1294
    %v1377 = vpop.f32.mrb[0].mxu0
    %v1378 = vadd.f32 %v26, %v1377
    %v1379 = vpop.f32.mrb[0].mxu0
    %1380 = vdwg.mxu0
    %v1381 = vadd.f32 %v1110, %v1378
    %s1382 = scalar_lea.vmem [#allocation2], 40
    %1383 = vst [vmem:[%s1382] sm:$0xff] %v1381
    %v1384 = vld [vmem:[%s1] sm:$0xff]
    %v1385 = vld [vmem:[%s1 + $0x8] sm:$0xff]
    %v1386 = vld [vmem:[%s1 + $0x10] sm:$0xff]
    %v1387 = vld [vmem:[%s1 + $0x18] sm:$0xff]
    %v1388 = vld [vmem:[%s1 + $0x20] sm:$0xff]
    %v1389 = vld [vmem:[%s1 + $0x28] sm:$0xff]
    %v1390 = vld [vmem:[%s1 + $0x30] sm:$0xff]
    %v1391 = vld [vmem:[%s1 + $0x38] sm:$0xff]
    %v1392 = vld [vmem:[%s1 + $0x40] sm:$0xff]
    %v1393 = vld [vmem:[%s1 + $0x48] sm:$0xff]
    %v1394 = vld [vmem:[%s1 + $0x50] sm:$0xff]
    %v1395 = vld [vmem:[%s1 + $0x58] sm:$0xff]
    %v1396 = vld [vmem:[%s1 + $0x60] sm:$0xff]
    %v1397 = vld [vmem:[%s1 + $0x68] sm:$0xff]
    %v1398 = vld [vmem:[%s1 + $0x70] sm:$0xff]
    %v1399 = vld [vmem:[%s1 + $0x78] sm:$0xff]
    %1400 = vmatprep.subr.mxu0 0.0
    %1401 = vmatpush1.msra.mxu0 %v1384
    %1402 = vmatprep.subr.mxu0 0.0
    %1403 = vmatpush1.msra.mxu0 %v1385
    %1404 = vmatprep.subr.mxu0 0.0
    %1405 = vmatpush1.msra.mxu0 %v1386
    %1406 = vmatprep.subr.mxu0 0.0
    %1407 = vmatpush1.msra.mxu0 %v1387
    %1408 = vmatprep.subr.mxu0 0.0
    %1409 = vmatpush1.msra.mxu0 %v1388
    %1410 = vmatprep.subr.mxu0 0.0
    %1411 = vmatpush1.msra.mxu0 %v1389
    %1412 = vmatprep.subr.mxu0 0.0
    %1413 = vmatpush1.msra.mxu0 %v1390
    %1414 = vmatprep.subr.mxu0 0.0
    %1415 = vmatpush1.msra.mxu0 %v1391
    %1416 = vmatprep.subr.mxu0 0.0
    %1417 = vmatpush1.msra.mxu0 %v1392
    %1418 = vmatprep.subr.mxu0 0.0
    %1419 = vmatpush1.msra.mxu0 %v1393
    %1420 = vmatprep.subr.mxu0 0.0
    %1421 = vmatpush1.msra.mxu0 %v1394
    %1422 = vmatprep.subr.mxu0 0.0
    %1423 = vmatpush1.msra.mxu0 %v1395
    %1424 = vmatprep.subr.mxu0 0.0
    %1425 = vmatpush1.msra.mxu0 %v1396
    %1426 = vmatprep.subr.mxu0 0.0
    %1427 = vmatpush1.msra.mxu0 %v1397
    %1428 = vmatprep.subr.mxu0 0.0
    %1429 = vmatpush1.msra.mxu0 %v1398
    %1430 = vmatprep.subr.mxu0 0.0
    %1431 = vmatpush1.msra.mxu0 %v1399
    %1432 = vmatprep.subr.mxu0 0.0
    %1433 = vmatpush1.msra.mxu0 0.0
    %1434 = vmatprep.subr.mxu0 0.0
    %1435 = vmatpush1.msra.mxu0 0.0
    %1436 = vmatprep.subr.mxu0 0.0
    %1437 = vmatpush1.msra.mxu0 0.0
    %1438 = vmatprep.subr.mxu0 0.0
    %1439 = vmatpush1.msra.mxu0 0.0
    %1440 = vmatprep.subr.mxu0 0.0
    %1441 = vmatpush1.msra.mxu0 0.0
    %1442 = vmatprep.subr.mxu0 0.0
    %1443 = vmatpush1.msra.mxu0 0.0
    %1444 = vmatprep.subr.mxu0 0.0
    %1445 = vmatpush1.msra.mxu0 0.0
    %1446 = vmatprep.subr.mxu0 0.0
    %1447 = vmatpush1.msra.mxu0 0.0
    %1448 = vmatprep.subr.mxu0 0.0
    %1449 = vmatpush1.msra.mxu0 0.0
    %1450 = vmatprep.subr.mxu0 0.0
    %1451 = vmatpush1.msra.mxu0 0.0
    %1452 = vmatprep.subr.mxu0 0.0
    %1453 = vmatpush1.msra.mxu0 0.0
    %1454 = vmatprep.subr.mxu0 0.0
    %1455 = vmatpush1.msra.mxu0 0.0
    %1456 = vmatprep.subr.mxu0 0.0
    %1457 = vmatpush1.msra.mxu0 0.0
    %1458 = vmatprep.subr.mxu0 0.0
    %1459 = vmatpush1.msra.mxu0 0.0
    %1460 = vmatprep.subr.mxu0 0.0
    %1461 = vmatpush1.msra.mxu0 0.0
    %1462 = vmatprep.subr.mxu0 0.0
    %1463 = vmatpush1.msra.mxu0 0.0
    %1464 = vmatprep.mubr.f32.mxu0 0.0
    %1465 = vmatmul.mubr.f32.gmra.mrb[0].mxu0 %v1381
    %v1466 = vpop.f32.mrb[0].mxu0
    %v1467 = vadd.f32 %v16, %v1466
    %v1468 = vpop.f32.mrb[0].mxu0
    %1469 = vdwg.mxu0
    %v1470 = vtanh.pop %v1467
    %v1471 = vld [vmem:[%s1 + $0x88] sm:$0xff]
    %v1472 = vld [vmem:[%s1 + $0x90] sm:$0xff]
    %v1473 = vld [vmem:[%s1 + $0x98] sm:$0xff]
    %v1474 = vld [vmem:[%s1 + $0xa0] sm:$0xff]
    %v1475 = vld [vmem:[%s1 + $0xa8] sm:$0xff]
    %v1476 = vld [vmem:[%s1 + $0xb0] sm:$0xff]
    %v1477 = vld [vmem:[%s1 + $0xb8] sm:$0xff]
    %v1478 = vld [vmem:[%s1 + $0xc0] sm:$0xff]
    %v1479 = vld [vmem:[%s1 + $0xc8] sm:$0xff]
    %v1480 = vld [vmem:[%s1 + $0xd0] sm:$0xff]
    %v1481 = vld [vmem:[%s1 + $0xd8] sm:$0xff]
    %v1482 = vld [vmem:[%s1 + $0xe0] sm:$0xff]
    %v1483 = vld [vmem:[%s1 + $0xe8] sm:$0xff]
    %v1484 = vld [vmem:[%s1 + $0xf0] sm:$0xff]
    %v1485 = vld [vmem:[%s1 + $0xf8] sm:$0xff]
    %v1486 = vld [vmem:[%s1 + $0x100] sm:$0xff]
    %1487 = vmatprep.subr.mxu0 0.0
    %1488 = vmatpush1.msra.mxu0 %v1471
    %1489 = vmatprep.subr.mxu0 0.0
    %1490 = vmatpush1.msra.mxu0 %v1472
    %1491 = vmatprep.subr.mxu0 0.0
    %1492 = vmatpush1.msra.mxu0 %v1473
    %1493 = vmatprep.subr.mxu0 0.0
    %1494 = vmatpush1.msra.mxu0 %v1474
    %1495 = vmatprep.subr.mxu0 0.0
    %1496 = vmatpush1.msra.mxu0 %v1475
    %1497 = vmatprep.subr.mxu0 0.0
    %1498 = vmatpush1.msra.mxu0 %v1476
    %1499 = vmatprep.subr.mxu0 0.0
    %1500 = vmatpush1.msra.mxu0 %v1477
    %1501 = vmatprep.subr.mxu0 0.0
    %1502 = vmatpush1.msra.mxu0 %v1478
    %1503 = vmatprep.subr.mxu0 0.0
    %1504 = vmatpush1.msra.mxu0 %v1479
    %1505 = vmatprep.subr.mxu0 0.0
    %1506 = vmatpush1.msra.mxu0 %v1480
    %1507 = vmatprep.subr.mxu0 0.0
    %1508 = vmatpush1.msra.mxu0 %v1481
    %1509 = vmatprep.subr.mxu0 0.0
    %1510 = vmatpush1.msra.mxu0 %v1482
    %1511 = vmatprep.subr.mxu0 0.0
    %1512 = vmatpush1.msra.mxu0 %v1483
    %1513 = vmatprep.subr.mxu0 0.0
    %1514 = vmatpush1.msra.mxu0 %v1484
    %1515 = vmatprep.subr.mxu0 0.0
    %1516 = vmatpush1.msra.mxu0 %v1485
    %1517 = vmatprep.subr.mxu0 0.0
    %1518 = vmatpush1.msra.mxu0 %v1486
    %1519 = vmatprep.subr.mxu0 0.0
    %1520 = vmatpush1.msra.mxu0 0.0
    %1521 = vmatprep.subr.mxu0 0.0
    %1522 = vmatpush1.msra.mxu0 0.0
    %1523 = vmatprep.subr.mxu0 0.0
    %1524 = vmatpush1.msra.mxu0 0.0
    %1525 = vmatprep.subr.mxu0 0.0
    %1526 = vmatpush1.msra.mxu0 0.0
    %1527 = vmatprep.subr.mxu0 0.0
    %1528 = vmatpush1.msra.mxu0 0.0
    %1529 = vmatprep.subr.mxu0 0.0
    %1530 = vmatpush1.msra.mxu0 0.0
    %1531 = vmatprep.subr.mxu0 0.0
    %1532 = vmatpush1.msra.mxu0 0.0
    %1533 = vmatprep.subr.mxu0 0.0
    %1534 = vmatpush1.msra.mxu0 0.0
    %1535 = vmatprep.subr.mxu0 0.0
    %1536 = vmatpush1.msra.mxu0 0.0
    %1537 = vmatprep.subr.mxu0 0.0
    %1538 = vmatpush1.msra.mxu0 0.0
    %1539 = vmatprep.subr.mxu0 0.0
    %1540 = vmatpush1.msra.mxu0 0.0
    %1541 = vmatprep.subr.mxu0 0.0
    %1542 = vmatpush1.msra.mxu0 0.0
    %1543 = vmatprep.subr.mxu0 0.0
    %1544 = vmatpush1.msra.mxu0 0.0
    %1545 = vmatprep.subr.mxu0 0.0
    %1546 = vmatpush1.msra.mxu0 0.0
    %1547 = vmatprep.subr.mxu0 0.0
    %1548 = vmatpush1.msra.mxu0 0.0
    %1549 = vmatprep.subr.mxu0 0.0
    %1550 = vmatpush1.msra.mxu0 0.0
    %1551 = vmatprep.mubr.f32.mxu0 0.0
    %1552 = vmatmul.mubr.f32.gmra.mrb[0].mxu0 %v1470
    %v1553 = vpop.f32.mrb[0].mxu0
    %v1554 = vadd.f32 %v21, %v1553
    %v1555 = vpop.f32.mrb[0].mxu0
    %1556 = vdwg.mxu0
    %v1557 = vmax.f32 %v1554, 0.0
    %v1558 = vand.u32 2147483647, %v1554
    %v1559 = vsub.f32 0.0, %v1558
    %v1560 = vmul.f32 %v1559, 1.442695
    %v1561 = vpow.pop %v1560
    %v1562 = vadd.f32 %v1561, 1.0
    %v1563 = vlog2.pop %v1562
    %v1564 = vmul.f32 %v1563, 0.6931472
    %v1565 = vadd.f32 %v1557, %v1564
    %v1566 = vld [vmem:[%s1 + $0x110] sm:$0xff]
    %v1567 = vld [vmem:[%s1 + $0x118] sm:$0xff]
    %v1568 = vld [vmem:[%s1 + $0x120] sm:$0xff]
    %v1569 = vld [vmem:[%s1 + $0x128] sm:$0xff]
    %v1570 = vld [vmem:[%s1 + $0x130] sm:$0xff]
    %v1571 = vld [vmem:[%s1 + $0x138] sm:$0xff]
    %v1572 = vld [vmem:[%s1 + $0x140] sm:$0xff]
    %v1573 = vld [vmem:[%s1 + $0x148] sm:$0xff]
    %v1574 = vld [vmem:[%s1 + $0x150] sm:$0xff]
    %v1575 = vld [vmem:[%s1 + $0x158] sm:$0xff]
    %v1576 = vld [vmem:[%s1 + $0x160] sm:$0xff]
    %v1577 = vld [vmem:[%s1 + $0x168] sm:$0xff]
    %v1578 = vld [vmem:[%s1 + $0x170] sm:$0xff]
    %v1579 = vld [vmem:[%s1 + $0x178] sm:$0xff]
    %v1580 = vld [vmem:[%s1 + $0x180] sm:$0xff]
    %v1581 = vld [vmem:[%s1 + $0x188] sm:$0xff]
    %1582 = vmatprep.subr.mxu0 0.0
    %1583 = vmatpush1.msra.mxu0 %v1566
    %1584 = vmatprep.subr.mxu0 0.0
    %1585 = vmatpush1.msra.mxu0 %v1567
    %1586 = vmatprep.subr.mxu0 0.0
    %1587 = vmatpush1.msra.mxu0 %v1568
    %1588 = vmatprep.subr.mxu0 0.0
    %1589 = vmatpush1.msra.mxu0 %v1569
    %1590 = vmatprep.subr.mxu0 0.0
    %1591 = vmatpush1.msra.mxu0 %v1570
    %1592 = vmatprep.subr.mxu0 0.0
    %1593 = vmatpush1.msra.mxu0 %v1571
    %1594 = vmatprep.subr.mxu0 0.0
    %1595 = vmatpush1.msra.mxu0 %v1572
    %1596 = vmatprep.subr.mxu0 0.0
    %1597 = vmatpush1.msra.mxu0 %v1573
    %1598 = vmatprep.subr.mxu0 0.0
    %1599 = vmatpush1.msra.mxu0 %v1574
    %1600 = vmatprep.subr.mxu0 0.0
    %1601 = vmatpush1.msra.mxu0 %v1575
    %1602 = vmatprep.subr.mxu0 0.0
    %1603 = vmatpush1.msra.mxu0 %v1576
    %1604 = vmatprep.subr.mxu0 0.0
    %1605 = vmatpush1.msra.mxu0 %v1577
    %1606 = vmatprep.subr.mxu0 0.0
    %1607 = vmatpush1.msra.mxu0 %v1578
    %1608 = vmatprep.subr.mxu0 0.0
    %1609 = vmatpush1.msra.mxu0 %v1579
    %1610 = vmatprep.subr.mxu0 0.0
    %1611 = vmatpush1.msra.mxu0 %v1580
    %1612 = vmatprep.subr.mxu0 0.0
    %1613 = vmatpush1.msra.mxu0 %v1581
    %1614 = vmatprep.subr.mxu0 0.0
    %1615 = vmatpush1.msra.mxu0 0.0
    %1616 = vmatprep.subr.mxu0 0.0
    %1617 = vmatpush1.msra.mxu0 0.0
    %1618 = vmatprep.subr.mxu0 0.0
    %1619 = vmatpush1.msra.mxu0 0.0
    %1620 = vmatprep.subr.mxu0 0.0
    %1621 = vmatpush1.msra.mxu0 0.0
    %1622 = vmatprep.subr.mxu0 0.0
    %1623 = vmatpush1.msra.mxu0 0.0
    %1624 = vmatprep.subr.mxu0 0.0
    %1625 = vmatpush1.msra.mxu0 0.0
    %1626 = vmatprep.subr.mxu0 0.0
    %1627 = vmatpush1.msra.mxu0 0.0
    %1628 = vmatprep.subr.mxu0 0.0
    %1629 = vmatpush1.msra.mxu0 0.0
    %1630 = vmatprep.subr.mxu0 0.0
    %1631 = vmatpush1.msra.mxu0 0.0
    %1632 = vmatprep.subr.mxu0 0.0
    %1633 = vmatpush1.msra.mxu0 0.0
    %1634 = vmatprep.subr.mxu0 0.0
    %1635 = vmatpush1.msra.mxu0 0.0
    %1636 = vmatprep.subr.mxu0 0.0
    %1637 = vmatpush1.msra.mxu0 0.0
    %1638 = vmatprep.subr.mxu0 0.0
    %1639 = vmatpush1.msra.mxu0 0.0
    %1640 = vmatprep.subr.mxu0 0.0
    %1641 = vmatpush1.msra.mxu0 0.0
    %1642 = vmatprep.subr.mxu0 0.0
    %1643 = vmatpush1.msra.mxu0 0.0
    %1644 = vmatprep.subr.mxu0 0.0
    %1645 = vmatpush1.msra.mxu0 0.0
    %1646 = vmatprep.mubr.f32.mxu0 0.0
    %1647 = vmatmul.mubr.f32.gmra.mrb[0].mxu0 %v1565
    %v1648 = vpop.f32.mrb[0].mxu0
    %v1649 = vadd.f32 %v26, %v1648
    %v1650 = vpop.f32.mrb[0].mxu0
    %1651 = vdwg.mxu0
    %v1652 = vadd.f32 %v1381, %v1649
    %s1653 = scalar_lea.vmem [#allocation2], 48
    %1654 = vst [vmem:[%s1653] sm:$0xff] %v1652
    %v1655 = vld [vmem:[%s1] sm:$0xff]
    %v1656 = vld [vmem:[%s1 + $0x8] sm:$0xff]
    %v1657 = vld [vmem:[%s1 + $0x10] sm:$0xff]
    %v1658 = vld [vmem:[%s1 + $0x18] sm:$0xff]
    %v1659 = vld [vmem:[%s1 + $0x20] sm:$0xff]
    %v1660 = vld [vmem:[%s1 + $0x28] sm:$0xff]
    %v1661 = vld [vmem:[%s1 + $0x30] sm:$0xff]
    %v1662 = vld [vmem:[%s1 + $0x38] sm:$0xff]
    %v1663 = vld [vmem:[%s1 + $0x40] sm:$0xff]
    %v1664 = vld [vmem:[%s1 + $0x48] sm:$0xff]
    %v1665 = vld [vmem:[%s1 + $0x50] sm:$0xff]
    %v1666 = vld [vmem:[%s1 + $0x58] sm:$0xff]
    %v1667 = vld [vmem:[%s1 + $0x60] sm:$0xff]
    %v1668 = vld [vmem:[%s1 + $0x68] sm:$0xff]
    %v1669 = vld [vmem:[%s1 + $0x70] sm:$0xff]
    %v1670 = vld [vmem:[%s1 + $0x78] sm:$0xff]
    %1671 = vmatprep.subr.mxu0 0.0
    %1672 = vmatpush1.msra.mxu0 %v1655
    %1673 = vmatprep.subr.mxu0 0.0
    %1674 = vmatpush1.msra.mxu0 %v1656
    %1675 = vmatprep.subr.mxu0 0.0
    %1676 = vmatpush1.msra.mxu0 %v1657
    %1677 = vmatprep.subr.mxu0 0.0
    %1678 = vmatpush1.msra.mxu0 %v1658
    %1679 = vmatprep.subr.mxu0 0.0
    %1680 = vmatpush1.msra.mxu0 %v1659
    %1681 = vmatprep.subr.mxu0 0.0
    %1682 = vmatpush1.msra.mxu0 %v1660
    %1683 = vmatprep.subr.mxu0 0.0
    %1684 = vmatpush1.msra.mxu0 %v1661
    %1685 = vmatprep.subr.mxu0 0.0
    %1686 = vmatpush1.msra.mxu0 %v1662
    %1687 = vmatprep.subr.mxu0 0.0
    %1688 = vmatpush1.msra.mxu0 %v1663
    %1689 = vmatprep.subr.mxu0 0.0
    %1690 = vmatpush1.msra.mxu0 %v1664
    %1691 = vmatprep.subr.mxu0 0.0
    %1692 = vmatpush1.msra.mxu0 %v1665
    %1693 = vmatprep.subr.mxu0 0.0
    %1694 = vmatpush1.msra.mxu0 %v1666
    %1695 = vmatprep.subr.mxu0 0.0
    %1696 = vmatpush1.msra.mxu0 %v1667
    %1697 = vmatprep.subr.mxu0 0.0
    %1698 = vmatpush1.msra.mxu0 %v1668
    %1699 = vmatprep.subr.mxu0 0.0
    %1700 = vmatpush1.msra.mxu0 %v1669
    %1701 = vmatprep.subr.mxu0 0.0
    %1702 = vmatpush1.msra.mxu0 %v1670
    %1703 = vmatprep.subr.mxu0 0.0
    %1704 = vmatpush1.msra.mxu0 0.0
    %1705 = vmatprep.subr.mxu0 0.0
    %1706 = vmatpush1.msra.mxu0 0.0
    %1707 = vmatprep.subr.mxu0 0.0
    %1708 = vmatpush1.msra.mxu0 0.0
    %1709 = vmatprep.subr.mxu0 0.0
    %1710 = vmatpush1.msra.mxu0 0.0
    %1711 = vmatprep.subr.mxu0 0.0
    %1712 = vmatpush1.msra.mxu0 0.0
    %1713 = vmatprep.subr.mxu0 0.0
    %1714 = vmatpush1.msra.mxu0 0.0
    %1715 = vmatprep.subr.mxu0 0.0
    %1716 = vmatpush1.msra.mxu0 0.0
    %1717 = vmatprep.subr.mxu0 0.0
    %1718 = vmatpush1.msra.mxu0 0.0
    %1719 = vmatprep.subr.mxu0 0.0
    %1720 = vmatpush1.msra.mxu0 0.0
    %1721 = vmatprep.subr.mxu0 0.0
    %1722 = vmatpush1.msra.mxu0 0.0
    %1723 = vmatprep.subr.mxu0 0.0
    %1724 = vmatpush1.msra.mxu0 0.0
    %1725 = vmatprep.subr.mxu0 0.0
    %1726 = vmatpush1.msra.mxu0 0.0
    %1727 = vmatprep.subr.mxu0 0.0
    %1728 = vmatpush1.msra.mxu0 0.0
    %1729 = vmatprep.subr.mxu0 0.0
    %1730 = vmatpush1.msra.mxu0 0.0
    %1731 = vmatprep.subr.mxu0 0.0
    %1732 = vmatpush1.msra.mxu0 0.0
    %1733 = vmatprep.subr.mxu0 0.0
    %1734 = vmatpush1.msra.mxu0 0.0
    %1735 = vmatprep.mubr.f32.mxu0 0.0
    %1736 = vmatmul.mubr.f32.gmra.mrb[0].mxu0 %v1652
    %v1737 = vpop.f32.mrb[0].mxu0
    %v1738 = vadd.f32 %v16, %v1737
    %v1739 = vpop.f32.mrb[0].mxu0
    %1740 = vdwg.mxu0
    %v1741 = vtanh.pop %v1738
    %v1742 = vld [vmem:[%s1 + $0x88] sm:$0xff]
    %v1743 = vld [vmem:[%s1 + $0x90] sm:$0xff]
    %v1744 = vld [vmem:[%s1 + $0x98] sm:$0xff]
    %v1745 = vld [vmem:[%s1 + $0xa0] sm:$0xff]
    %v1746 = vld [vmem:[%s1 + $0xa8] sm:$0xff]
    %v1747 = vld [vmem:[%s1 + $0xb0] sm:$0xff]
    %v1748 = vld [vmem:[%s1 + $0xb8] sm:$0xff]
    %v1749 = vld [vmem:[%s1 + $0xc0] sm:$0xff]
    %v1750 = vld [vmem:[%s1 + $0xc8] sm:$0xff]
    %v1751 = vld [vmem:[%s1 + $0xd0] sm:$0xff]
    %v1752 = vld [vmem:[%s1 + $0xd8] sm:$0xff]
    %v1753 = vld [vmem:[%s1 + $0xe0] sm:$0xff]
    %v1754 = vld [vmem:[%s1 + $0xe8] sm:$0xff]
    %v1755 = vld [vmem:[%s1 + $0xf0] sm:$0xff]
    %v1756 = vld [vmem:[%s1 + $0xf8] sm:$0xff]
    %v1757 = vld [vmem:[%s1 + $0x100] sm:$0xff]
    %1758 = vmatprep.subr.mxu0 0.0
    %1759 = vmatpush1.msra.mxu0 %v1742
    %1760 = vmatprep.subr.mxu0 0.0
    %1761 = vmatpush1.msra.mxu0 %v1743
    %1762 = vmatprep.subr.mxu0 0.0
    %1763 = vmatpush1.msra.mxu0 %v1744
    %1764 = vmatprep.subr.mxu0 0.0
    %1765 = vmatpush1.msra.mxu0 %v1745
    %1766 = vmatprep.subr.mxu0 0.0
    %1767 = vmatpush1.msra.mxu0 %v1746
    %1768 = vmatprep.subr.mxu0 0.0
    %1769 = vmatpush1.msra.mxu0 %v1747
    %1770 = vmatprep.subr.mxu0 0.0
    %1771 = vmatpush1.msra.mxu0 %v1748
    %1772 = vmatprep.subr.mxu0 0.0
    %1773 = vmatpush1.msra.mxu0 %v1749
    %1774 = vmatprep.subr.mxu0 0.0
    %1775 = vmatpush1.msra.mxu0 %v1750
    %1776 = vmatprep.subr.mxu0 0.0
    %1777 = vmatpush1.msra.mxu0 %v1751
    %1778 = vmatprep.subr.mxu0 0.0
    %1779 = vmatpush1.msra.mxu0 %v1752
    %1780 = vmatprep.subr.mxu0 0.0
    %1781 = vmatpush1.msra.mxu0 %v1753
    %1782 = vmatprep.subr.mxu0 0.0
    %1783 = vmatpush1.msra.mxu0 %v1754
    %1784 = vmatprep.subr.mxu0 0.0
    %1785 = vmatpush1.msra.mxu0 %v1755
    %1786 = vmatprep.subr.mxu0 0.0
    %1787 = vmatpush1.msra.mxu0 %v1756
    %1788 = vmatprep.subr.mxu0 0.0
    %1789 = vmatpush1.msra.mxu0 %v1757
    %1790 = vmatprep.subr.mxu0 0.0
    %1791 = vmatpush1.msra.mxu0 0.0
    %1792 = vmatprep.subr.mxu0 0.0
    %1793 = vmatpush1.msra.mxu0 0.0
    %1794 = vmatprep.subr.mxu0 0.0
    %1795 = vmatpush1.msra.mxu0 0.0
    %1796 = vmatprep.subr.mxu0 0.0
    %1797 = vmatpush1.msra.mxu0 0.0
    %1798 = vmatprep.subr.mxu0 0.0
    %1799 = vmatpush1.msra.mxu0 0.0
    %1800 = vmatprep.subr.mxu0 0.0
    %1801 = vmatpush1.msra.mxu0 0.0
    %1802 = vmatprep.subr.mxu0 0.0
    %1803 = vmatpush1.msra.mxu0 0.0
    %1804 = vmatprep.subr.mxu0 0.0
    %1805 = vmatpush1.msra.mxu0 0.0
    %1806 = vmatprep.subr.mxu0 0.0
    %1807 = vmatpush1.msra.mxu0 0.0
    %1808 = vmatprep.subr.mxu0 0.0
    %1809 = vmatpush1.msra.mxu0 0.0
    %1810 = vmatprep.subr.mxu0 0.0
    %1811 = vmatpush1.msra.mxu0 0.0
    %1812 = vmatprep.subr.mxu0 0.0
    %1813 = vmatpush1.msra.mxu0 0.0
    %1814 = vmatprep.subr.mxu0 0.0
    %1815 = vmatpush1.msra.mxu0 0.0
    %1816 = vmatprep.subr.mxu0 0.0
    %1817 = vmatpush1.msra.mxu0 0.0
    %1818 = vmatprep.subr.mxu0 0.0
    %1819 = vmatpush1.msra.mxu0 0.0
    %1820 = vmatprep.subr.mxu0 0.0
    %1821 = vmatpush1.msra.mxu0 0.0
    %1822 = vmatprep.mubr.f32.mxu0 0.0
    %1823 = vmatmul.mubr.f32.gmra.mrb[0].mxu0 %v1741
    %v1824 = vpop.f32.mrb[0].mxu0
    %v1825 = vadd.f32 %v21, %v1824
    %v1826 = vpop.f32.mrb[0].mxu0
    %1827 = vdwg.mxu0
    %v1828 = vmax.f32 %v1825, 0.0
    %v1829 = vand.u32 2147483647, %v1825
    %v1830 = vsub.f32 0.0, %v1829
    %v1831 = vmul.f32 %v1830, 1.442695
    %v1832 = vpow.pop %v1831
    %v1833 = vadd.f32 %v1832, 1.0
    %v1834 = vlog2.pop %v1833
    %v1835 = vmul.f32 %v1834, 0.6931472
    %v1836 = vadd.f32 %v1828, %v1835
    %v1837 = vld [vmem:[%s1 + $0x110] sm:$0xff]
    %v1838 = vld [vmem:[%s1 + $0x118] sm:$0xff]
    %v1839 = vld [vmem:[%s1 + $0x120] sm:$0xff]
    %v1840 = vld [vmem:[%s1 + $0x128] sm:$0xff]
    %v1841 = vld [vmem:[%s1 + $0x130] sm:$0xff]
    %v1842 = vld [vmem:[%s1 + $0x138] sm:$0xff]
    %v1843 = vld [vmem:[%s1 + $0x140] sm:$0xff]
    %v1844 = vld [vmem:[%s1 + $0x148] sm:$0xff]
    %v1845 = vld [vmem:[%s1 + $0x150] sm:$0xff]
    %v1846 = vld [vmem:[%s1 + $0x158] sm:$0xff]
    %v1847 = vld [vmem:[%s1 + $0x160] sm:$0xff]
    %v1848 = vld [vmem:[%s1 + $0x168] sm:$0xff]
    %v1849 = vld [vmem:[%s1 + $0x170] sm:$0xff]
    %v1850 = vld [vmem:[%s1 + $0x178] sm:$0xff]
    %v1851 = vld [vmem:[%s1 + $0x180] sm:$0xff]
    %v1852 = vld [vmem:[%s1 + $0x188] sm:$0xff]
    %1853 = vmatprep.subr.mxu0 0.0
    %1854 = vmatpush1.msra.mxu0 %v1837
    %1855 = vmatprep.subr.mxu0 0.0
    %1856 = vmatpush1.msra.mxu0 %v1838
    %1857 = vmatprep.subr.mxu0 0.0
    %1858 = vmatpush1.msra.mxu0 %v1839
    %1859 = vmatprep.subr.mxu0 0.0
    %1860 = vmatpush1.msra.mxu0 %v1840
    %1861 = vmatprep.subr.mxu0 0.0
    %1862 = vmatpush1.msra.mxu0 %v1841
    %1863 = vmatprep.subr.mxu0 0.0
    %1864 = vmatpush1.msra.mxu0 %v1842
    %1865 = vmatprep.subr.mxu0 0.0
    %1866 = vmatpush1.msra.mxu0 %v1843
    %1867 = vmatprep.subr.mxu0 0.0
    %1868 = vmatpush1.msra.mxu0 %v1844
    %1869 = vmatprep.subr.mxu0 0.0
    %1870 = vmatpush1.msra.mxu0 %v1845
    %1871 = vmatprep.subr.mxu0 0.0
    %1872 = vmatpush1.msra.mxu0 %v1846
    %1873 = vmatprep.subr.mxu0 0.0
    %1874 = vmatpush1.msra.mxu0 %v1847
    %1875 = vmatprep.subr.mxu0 0.0
    %1876 = vmatpush1.msra.mxu0 %v1848
    %1877 = vmatprep.subr.mxu0 0.0
    %1878 = vmatpush1.msra.mxu0 %v1849
    %1879 = vmatprep.subr.mxu0 0.0
    %1880 = vmatpush1.msra.mxu0 %v1850
    %1881 = vmatprep.subr.mxu0 0.0
    %1882 = vmatpush1.msra.mxu0 %v1851
    %1883 = vmatprep.subr.mxu0 0.0
    %1884 = vmatpush1.msra.mxu0 %v1852
    %1885 = vmatprep.subr.mxu0 0.0
    %1886 = vmatpush1.msra.mxu0 0.0
    %1887 = vmatprep.subr.mxu0 0.0
    %1888 = vmatpush1.msra.mxu0 0.0
    %1889 = vmatprep.subr.mxu0 0.0
    %1890 = vmatpush1.msra.mxu0 0.0
    %1891 = vmatprep.subr.mxu0 0.0
    %1892 = vmatpush1.msra.mxu0 0.0
    %1893 = vmatprep.subr.mxu0 0.0
    %1894 = vmatpush1.msra.mxu0 0.0
    %1895 = vmatprep.subr.mxu0 0.0
    %1896 = vmatpush1.msra.mxu0 0.0
    %1897 = vmatprep.subr.mxu0 0.0
    %1898 = vmatpush1.msra.mxu0 0.0
    %1899 = vmatprep.subr.mxu0 0.0
    %1900 = vmatpush1.msra.mxu0 0.0
    %1901 = vmatprep.subr.mxu0 0.0
    %1902 = vmatpush1.msra.mxu0 0.0
    %1903 = vmatprep.subr.mxu0 0.0
    %1904 = vmatpush1.msra.mxu0 0.0
    %1905 = vmatprep.subr.mxu0 0.0
    %1906 = vmatpush1.msra.mxu0 0.0
    %1907 = vmatprep.subr.mxu0 0.0
    %1908 = vmatpush1.msra.mxu0 0.0
    %1909 = vmatprep.subr.mxu0 0.0
    %1910 = vmatpush1.msra.mxu0 0.0
    %1911 = vmatprep.subr.mxu0 0.0
    %1912 = vmatpush1.msra.mxu0 0.0
    %1913 = vmatprep.subr.mxu0 0.0
    %1914 = vmatpush1.msra.mxu0 0.0
    %1915 = vmatprep.subr.mxu0 0.0
    %1916 = vmatpush1.msra.mxu0 0.0
    %1917 = vmatprep.mubr.f32.mxu0 0.0
    %1918 = vmatmul.mubr.f32.gmra.mrb[0].mxu0 %v1836
    %v1919 = vpop.f32.mrb[0].mxu0
    %v1920 = vadd.f32 %v26, %v1919
    %v1921 = vpop.f32.mrb[0].mxu0
    %1922 = vdwg.mxu0
    %v1923 = vadd.f32 %v1652, %v1920
    %s1924 = scalar_lea.vmem [#allocation2], 56
    %1925 = vst [vmem:[%s1924] sm:$0xff] %v1923
    // Predicated region
    $region10: #{forward.1} parent=1 // pred_check
      _
    $region11: #{forward.1} parent=1 // pred_check_branch
      %1927 = sbr.rel (0) target = $region13
    $region12: #{forward.1} parent=1 // pred_region
      %s1929 = ssub.s32 1024, 1024
      %1930 = vsyncadd [#allocation3], %s1929
      %s1931 = sshll.u32 [#allocation2], 4
      %s1932 = int_to_ptr.vmem [resolvable:$true] %s1931
      %1937 = dma.vmem_to_hbm [thread:$0]  %s1932, 1024, %s2, [#allocation3], 128, 128, 8
    $region13: #{forward.1} parent=1 // pred_fallthru
      _
    // Predicated region
    $region14: #{forward.1} parent=1 // pred_check
      _
    $region15: #{forward.1} parent=1 // pred_check_branch
      %1939 = sbr.rel (0) target = $region17
    $region16: #{forward.1} parent=1 // pred_region
      %1940 = dma.done [#allocation3], 1024
    $region17: #{forward.1} parent=1 // pred_fallthru
      _
    %1941 = vsyncpa [#allocation3], 1

</llo_original>
